<compile_context>
chip_gen: v5e
topology: v5e:2x2
jax: 0.10.0
libtpu: 0.0.40
codegen_flags: <defaults>
</compile_context>

<pallas_src>
import functools
import math

import jax
import jax.numpy as jnp
from jax import lax
from jax.experimental import pallas as pl
from jax.experimental.pallas import tpu as pltpu

_MASK_VALUE = -1e30  # large-but-finite; avoids -inf - (-inf) = NaN pitfalls
_NUM_LANES = 128


def _flash_sdpa_kernel(bias_ref, q_ref, k_ref, v_ref, o_ref,
                       m_scr, l_scr, acc_scr, *, inv_sqrt_d, tk, exp_dtype):
    ki = pl.program_id(3)

    @pl.when(ki == 0)
    def _init():
        m_scr[...] = jnp.full_like(m_scr, -jnp.inf)
        l_scr[...] = jnp.zeros_like(l_scr)
        acc_scr[...] = jnp.zeros_like(acc_scr)

    # Scale hoisted onto the (tq, D) q operand (not the (tq, tk) score tile).
    q_scaled = q_ref[...] * inv_sqrt_d
    # scores (tq, tk), f32 accumulation; contract last dims directly (no k.T).
    s = lax.dot_general(
        q_scaled, k_ref[...],
        dimension_numbers=(((1,), (1,)), ((), ())),
        preferred_element_type=jnp.float32,
    )

    # Additive mask bias sliced from the per-batch full row resident in VMEM.
    start = pl.multiple_of(ki * tk, tk)
    s = s + bias_ref[:, pl.ds(start, tk)]          # (1, tk) broadcasts over rows

    # Online softmax update; running stats are lane-replicated (tq, 128).
    m_prev = m_scr[...]                                       # (tq, 128)
    row_max = jnp.max(s, axis=-1, keepdims=True)              # (tq, 1)
    m_next = jnp.maximum(m_prev, row_max)                     # (tq, 128)
    alpha = jnp.exp(m_prev - m_next)                          # (tq, 128)

    # exp in bf16 on the bf16 path (EUP is the binding unit on v6e/v7x).
    p = jnp.exp((s - m_next[:, 0:1]).astype(exp_dtype))      # (tq, tk)

    l_scr[...] = alpha * l_scr[...] + jnp.sum(
        p.astype(jnp.float32), axis=-1, keepdims=True)
    acc_scr[...] = alpha[:, 0:1] * acc_scr[...] + jnp.dot(
        p.astype(v_ref.dtype), v_ref[...], preferred_element_type=jnp.float32)
    m_scr[...] = m_next

    @pl.when(ki == pl.num_programs(3) - 1)
    def _finalize():
        l = l_scr[...]
        # Exact divide once per q tile (negligible cost, keeps parity tight).
        o_ref[...] = (acc_scr[...] / l[:, 0:1]).astype(o_ref.dtype)


def _round_up(x, m):
    return (x + m - 1) // m * m


def _pick_tile(seq_pad, candidates):
    """Largest MXU-friendly tile dividing the (already 128-padded) sequence."""
    for t in candidates:
        if seq_pad >= t and seq_pad % t == 0:
            return t
    return 128  # unreachable: seq_pad is a multiple of 128 and 128 is a candidate


def scaled_dot_product_attention(k, q, v, attn_mask_bool, *, tq=None, tk=None):
    """k, q, v: (batch, heads, seq, model_dim); attn_mask_bool: (batch, seq) bool."""
    if attn_mask_bool.ndim != 2:
        raise ValueError(
            f"attention mask dim mismatch, expected '2' but received {attn_mask_bool.ndim}")
    B, H, S, D = q.shape

    # Pad seq to a multiple of 128 so proven tile sizes apply on all generations.
    S_pad = _round_up(S, 128)
    pad = S_pad - S

    # tq up to 512 (fewer q passes -> less K/V re-streaming), tk up to 1024
    # (fewer grid steps, denser MXU columns on v6e/v7x).
    tq = _pick_tile(S_pad, (512, 256, 128)) if tq is None else tq
    tk = _pick_tile(S_pad, (1024, 512, 256, 128)) if tk is None else tk
    assert S_pad % tq == 0 and S_pad % tk == 0

    # Additive f32 logit bias (0 = attend, -1e30 = masked); padded keys masked.
    bias = jnp.where(attn_mask_bool, 0.0, _MASK_VALUE).astype(jnp.float32)
    if pad:
        bias = jnp.pad(bias, ((0, 0), (0, pad)), constant_values=_MASK_VALUE)
        q = jnp.pad(q, ((0, 0), (0, 0), (0, pad), (0, 0)))
        k = jnp.pad(k, ((0, 0), (0, 0), (0, pad), (0, 0)))
        v = jnp.pad(v, ((0, 0), (0, 0), (0, pad), (0, 0)))
    bias = bias[:, None, :]                                   # (B, 1, S_pad)

    exp_dtype = jnp.bfloat16 if q.dtype == jnp.bfloat16 else jnp.float32
    kernel = functools.partial(_flash_sdpa_kernel,
                               inv_sqrt_d=1.0 / math.sqrt(D),
                               tk=tk, exp_dtype=exp_dtype)

    grid = (B, H, S_pad // tq, S_pad // tk)
    bias_spec = pl.BlockSpec((None, 1, S_pad), lambda b, h, qi, ki: (b, 0, 0))
    q_spec = pl.BlockSpec((None, None, tq, D), lambda b, h, qi, ki: (b, h, qi, 0))
    kv_spec = pl.BlockSpec((None, None, tk, D), lambda b, h, qi, ki: (b, h, ki, 0))
    out_spec = pl.BlockSpec((None, None, tq, D), lambda b, h, qi, ki: (b, h, qi, 0))

    out = pl.pallas_call(
        kernel,
        out_shape=jax.ShapeDtypeStruct((B, H, S_pad, D), q.dtype),
        grid_spec=pltpu.PrefetchScalarGridSpec(
            num_scalar_prefetch=0,
            grid=grid,
            in_specs=[bias_spec, q_spec, kv_spec, kv_spec],
            out_specs=out_spec,
            scratch_shapes=[
                pltpu.VMEM((tq, _NUM_LANES), jnp.float32),  # running max m
                pltpu.VMEM((tq, _NUM_LANES), jnp.float32),  # running denom l
                pltpu.VMEM((tq, D), jnp.float32),           # f32 output accumulator
            ],
        ),
        compiler_params=pltpu.CompilerParams(
            dimension_semantics=("parallel", "parallel", "parallel", "arbitrary"),
            vmem_limit_bytes=32 * 1024 * 1024,
        ),
    )(bias, q, k, v)

    if pad:
        out = out[:, :, :S, :]
    return out


def _reference_sdpa(k, q, v, attn_mask_bool):
    """Pure-JAX reference mirroring the PyTorch forward (dropout = identity)."""
    D = k.shape[-1]
    scores = jnp.einsum("bhqd,bhkd->bhqk",
                        q.astype(jnp.float32), k.astype(jnp.float32),
                        precision=jax.lax.Precision.HIGHEST) / math.sqrt(D)
    logit_mask = (1.0 - attn_mask_bool.astype(jnp.float32)) * -3.4028234663852886e+38
    scores = scores + logit_mask[:, None, None, :]
    w = jax.nn.softmax(scores, axis=-1)
    return jnp.einsum("bhqk,bhkd->bhqd", w, v.astype(jnp.float32),
                      precision=jax.lax.Precision.HIGHEST)


if __name__ == "__main__":
    key = jax.random.PRNGKey(0)
    B, H, S, D = 2, 4, 8, 32

    kq, kk, kv = jax.random.split(key, 3)
    q = jax.random.normal(kq, (B, H, S, D), dtype=jnp.float32)
    k = jax.random.normal(kk, (B, H, S, D), dtype=jnp.float32)
    v = jax.random.normal(kv, (B, H, S, D), dtype=jnp.float32)
    # deterministic mask: mask out the last two key positions of batch 1
    mask = jnp.ones((B, S), dtype=bool).at[1, -2:].set(False)

    ref = _reference_sdpa(k, q, v, mask)

    # f32 path.  Tolerance covers TPU default-precision f32 matmuls (bf16 passes)
    # differing between the kernel and the f32-HIGHEST reference.
    out = jax.block_until_ready(scaled_dot_product_attention(k, q, v, mask))
    assert out.shape == (B, H, S, D)
    err_f32 = jnp.max(jnp.abs(out - ref))
    assert jnp.allclose(out, ref, atol=2e-2, rtol=2e-2), \
        f"f32 mismatch vs reference (max abs err {err_f32})"

    # bf16 path (native MXU dtype, f32 accumulation, bf16 exp) -- looser tolerance.
    out_bf16 = jax.block_until_ready(
        scaled_dot_product_attention(
            k.astype(jnp.bfloat16), q.astype(jnp.bfloat16),
            v.astype(jnp.bfloat16), mask))
    assert out_bf16.shape == (B, H, S, D)
    err_bf16 = jnp.max(jnp.abs(out_bf16.astype(jnp.float32) - ref))
    assert jnp.allclose(out_bf16.astype(jnp.float32), ref, atol=7e-2, rtol=7e-2), \
        f"bf16 mismatch vs reference (max abs err {err_bf16})"

    print("KERNEL_OK")
</pallas_src>

<mosaic_0001>
module attributes {stable_mosaic.version = 11 : i64} {
  func.func @_flash_sdpa_kernel(%arg0: i32, %arg1: i32, %arg2: i32, %arg3: i32, %arg4: memref<1x1x128xf32, #tpu.memory_space<vmem>>, %arg5: memref<1x1x128x32xf32, #tpu.memory_space<vmem>>, %arg6: memref<1x1x128x32xf32, #tpu.memory_space<vmem>>, %arg7: memref<1x1x128x32xf32, #tpu.memory_space<vmem>>, %arg8: memref<1x1x128x32xf32, #tpu.memory_space<vmem>>, %arg9: memref<128x128xf32, #tpu.memory_space<vmem>>, %arg10: memref<128x128xf32, #tpu.memory_space<vmem>>, %arg11: memref<128x32xf32, #tpu.memory_space<vmem>>) attributes {dimension_semantics = [#tpu.dimension_semantics<parallel>, #tpu.dimension_semantics<parallel>, #tpu.dimension_semantics<parallel>, #tpu.dimension_semantics<arbitrary>], iteration_bounds = array<i64: 2, 4, 1, 1>, scalar_prefetch = 0 : i64, scratch_operands = 3 : i64, tpu.core_type = #tpu.core_type<tc>, window_params = [{transform_indices = @transform_0, window_bounds = array<i64: 1, 1, 128>}, {transform_indices = @transform_1, window_bounds = array<i64: 1, 1, 128, 32>}, {transform_indices = @transform_2, window_bounds = array<i64: 1, 1, 128, 32>}, {transform_indices = @transform_3, window_bounds = array<i64: 1, 1, 128, 32>}, {transform_indices = @transform_4, window_bounds = array<i64: 1, 1, 128, 32>}]} {
    %c0_i32 = arith.constant 0 : i32
    %0 = arith.cmpi eq, %arg3, %c0_i32 : i32
    %1 = arith.extui %0 : i1 to i32
    %c0_i32_0 = arith.constant 0 : i32
    %2 = arith.cmpi ne, %1, %c0_i32_0 : i32
    scf.if %2 {
      %cst_32 = arith.constant 0xFF800000 : f32
      %48 = vector.broadcast %cst_32 : f32 to vector<128x128xf32>
      %c0_33 = arith.constant 0 : index
      %c0_34 = arith.constant 0 : index
      %49 = vector.load %arg9[%c0_33, %c0_34] : memref<128x128xf32, #tpu.memory_space<vmem>>, vector<128x128xf32>
      tpu.vector_store %arg9[%c0_33, %c0_34], %48 {strides = array<i32>} : memref<128x128xf32, #tpu.memory_space<vmem>>, vector<128x128xf32>,
      %cst_35 = arith.constant 0.000000e+00 : f32
      %50 = vector.broadcast %cst_35 : f32 to vector<128x128xf32>
      %c0_36 = arith.constant 0 : index
      %c0_37 = arith.constant 0 : index
      %51 = vector.load %arg10[%c0_36, %c0_37] : memref<128x128xf32, #tpu.memory_space<vmem>>, vector<128x128xf32>
      tpu.vector_store %arg10[%c0_36, %c0_37], %50 {strides = array<i32>} : memref<128x128xf32, #tpu.memory_space<vmem>>, vector<128x128xf32>,
      %cst_38 = arith.constant 0.000000e+00 : f32
      %52 = vector.broadcast %cst_38 : f32 to vector<128x32xf32>
      %c0_39 = arith.constant 0 : index
      %c0_40 = arith.constant 0 : index
      %53 = vector.load %arg11[%c0_39, %c0_40] : memref<128x32xf32, #tpu.memory_space<vmem>>, vector<128x32xf32>
      tpu.vector_store %arg11[%c0_39, %c0_40], %52 {strides = array<i32>} : memref<128x32xf32, #tpu.memory_space<vmem>>, vector<128x32xf32>,
    } else {
    }
    %c0 = arith.constant 0 : index
    %c0_1 = arith.constant 0 : index
    %c0_2 = arith.constant 0 : index
    %c0_3 = arith.constant 0 : index
    %3 = vector.load %arg5[%c0, %c0_1, %c0_2, %c0_3] : memref<1x1x128x32xf32, #tpu.memory_space<vmem>>, vector<1x1x128x32xf32>
    %4 = vector.shape_cast %3 : vector<1x1x128x32xf32> to vector<128x32xf32>
    %cst = arith.constant 0.176776692 : f32
    %5 = vector.broadcast %cst : f32 to vector<128x32xf32>
    %6 = arith.mulf %4, %5 : vector<128x32xf32>
    %c0_4 = arith.constant 0 : index
    %c0_5 = arith.constant 0 : index
    %c0_6 = arith.constant 0 : index
    %c0_7 = arith.constant 0 : index
    %7 = vector.load %arg6[%c0_4, %c0_5, %c0_6, %c0_7] : memref<1x1x128x32xf32, #tpu.memory_space<vmem>>, vector<1x1x128x32xf32>
    %8 = vector.shape_cast %7 : vector<1x1x128x32xf32> to vector<128x32xf32>
    %cst_8 = arith.constant dense<0.000000e+00> : vector<128x128xf32>
    %9 = tpu.matmul %6, %8, %cst_8 {dimension_numbers = #tpu.dot_dimension_numbers<[1], [1], [0], [0], [0, 0, 1, 0], [], []>} : vector<128x32xf32>, vector<128x32xf32>, vector<128x128xf32> -> vector<128x128xf32>
    %c128_i32 = arith.constant 128 : i32
    %10 = arith.muli %arg3, %c128_i32 : i32
    %11 = tpu.assume_multiple %10, 128 : i32
    %c0_9 = arith.constant 0 : index
    %c0_10 = arith.constant 0 : index
    %12 = arith.index_cast %11 : i32 to index
    %13 = vector.load %arg4[%c0_9, %c0_10, %12] : memref<1x1x128xf32, #tpu.memory_space<vmem>>, vector<1x1x128xf32>
    %14 = vector.shape_cast %13 : vector<1x1x128xf32> to vector<1x128xf32>
    %15 = vector.broadcast %14 : vector<1x128xf32> to vector<128x128xf32>
    %16 = arith.addf %9, %15 : vector<128x128xf32>
    %c0_11 = arith.constant 0 : index
    %c0_12 = arith.constant 0 : index
    %17 = vector.load %arg9[%c0_11, %c0_12] : memref<128x128xf32, #tpu.memory_space<vmem>>, vector<128x128xf32>
    %cst_13 = arith.constant dense<0xFF800000> : vector<128xf32>
    %18 = vector.multi_reduction <maximumf>, %16, %cst_13 [1] : vector<128x128xf32> to vector<128xf32>
    %19 = vector.shape_cast %18 : vector<128xf32> to vector<128x1xf32>
    %20 = vector.broadcast %19 : vector<128x1xf32> to vector<128x128xf32>
    %21 = arith.maximumf %17, %20 : vector<128x128xf32>
    %22 = arith.subf %17, %21 : vector<128x128xf32>
    %23 = math.exp %22 : vector<128x128xf32>
    %24 = vector.extract_strided_slice %21 {offsets = [0, 0], sizes = [128, 1], strides = [1, 1]} : vector<128x128xf32> to vector<128x1xf32>
    %25 = vector.broadcast %24 : vector<128x1xf32> to vector<128x128xf32>
    %26 = arith.subf %16, %25 : vector<128x128xf32>
    %27 = math.exp %26 : vector<128x128xf32>
    %c0_14 = arith.constant 0 : index
    %c0_15 = arith.constant 0 : index
    %28 = vector.load %arg10[%c0_14, %c0_15] : memref<128x128xf32, #tpu.memory_space<vmem>>, vector<128x128xf32>
    %29 = arith.mulf %23, %28 : vector<128x128xf32>
    %cst_16 = arith.constant dense<0.000000e+00> : vector<128xf32>
    %30 = vector.multi_reduction <add>, %27, %cst_16 [1] : vector<128x128xf32> to vector<128xf32>
    %31 = vector.shape_cast %30 : vector<128xf32> to vector<128x1xf32>
    %32 = vector.broadcast %31 : vector<128x1xf32> to vector<128x128xf32>
    %33 = arith.addf %29, %32 : vector<128x128xf32>
    %c0_17 = arith.constant 0 : index
    %c0_18 = arith.constant 0 : index
    %34 = vector.load %arg10[%c0_17, %c0_18] : memref<128x128xf32, #tpu.memory_space<vmem>>, vector<128x128xf32>
    tpu.vector_store %arg10[%c0_17, %c0_18], %33 {strides = array<i32>} : memref<128x128xf32, #tpu.memory_space<vmem>>, vector<128x128xf32>,
    %35 = vector.extract_strided_slice %23 {offsets = [0, 0], sizes = [128, 1], strides = [1, 1]} : vector<128x128xf32> to vector<128x1xf32>
    %c0_19 = arith.constant 0 : index
    %c0_20 = arith.constant 0 : index
    %36 = vector.load %arg11[%c0_19, %c0_20] : memref<128x32xf32, #tpu.memory_space<vmem>>, vector<128x32xf32>
    %37 = vector.broadcast %35 : vector<128x1xf32> to vector<128x32xf32>
    %38 = arith.mulf %37, %36 : vector<128x32xf32>
    %c0_21 = arith.constant 0 : index
    %c0_22 = arith.constant 0 : index
    %c0_23 = arith.constant 0 : index
    %c0_24 = arith.constant 0 : index
    %39 = vector.load %arg7[%c0_21, %c0_22, %c0_23, %c0_24] : memref<1x1x128x32xf32, #tpu.memory_space<vmem>>, vector<1x1x128x32xf32>
    %40 = vector.shape_cast %39 : vector<1x1x128x32xf32> to vector<128x32xf32>
    %cst_25 = arith.constant dense<0.000000e+00> : vector<128x32xf32>
    %41 = tpu.matmul %27, %40, %cst_25 {dimension_numbers = #tpu.dot_dimension_numbers<[1], [0], [0], [1], [0, 0, 1, 1], [], []>} : vector<128x128xf32>, vector<128x32xf32>, vector<128x32xf32> -> vector<128x32xf32>
    %42 = arith.addf %38, %41 : vector<128x32xf32>
    %c0_26 = arith.constant 0 : index
    %c0_27 = arith.constant 0 : index
    %43 = vector.load %arg11[%c0_26, %c0_27] : memref<128x32xf32, #tpu.memory_space<vmem>>, vector<128x32xf32>
    tpu.vector_store %arg11[%c0_26, %c0_27], %42 {strides = array<i32>} : memref<128x32xf32, #tpu.memory_space<vmem>>, vector<128x32xf32>,
    %c0_28 = arith.constant 0 : index
    %c0_29 = arith.constant 0 : index
    %44 = vector.load %arg9[%c0_28, %c0_29] : memref<128x128xf32, #tpu.memory_space<vmem>>, vector<128x128xf32>
    tpu.vector_store %arg9[%c0_28, %c0_29], %21 {strides = array<i32>} : memref<128x128xf32, #tpu.memory_space<vmem>>, vector<128x128xf32>,
    %c0_i32_30 = arith.constant 0 : i32
    %45 = arith.cmpi eq, %arg3, %c0_i32_30 : i32
    %46 = arith.extui %45 : i1 to i32
    %c0_i32_31 = arith.constant 0 : i32
    %47 = arith.cmpi ne, %46, %c0_i32_31 : i32
    scf.if %47 {
      %c0_32 = arith.constant 0 : index
      %c0_33 = arith.constant 0 : index
      %48 = vector.load %arg10[%c0_32, %c0_33] : memref<128x128xf32, #tpu.memory_space<vmem>>, vector<128x128xf32>
      %c0_34 = arith.constant 0 : index
      %c0_35 = arith.constant 0 : index
      %49 = vector.load %arg11[%c0_34, %c0_35] : memref<128x32xf32, #tpu.memory_space<vmem>>, vector<128x32xf32>
      %50 = vector.extract_strided_slice %48 {offsets = [0, 0], sizes = [128, 1], strides = [1, 1]} : vector<128x128xf32> to vector<128x1xf32>
      %51 = vector.broadcast %50 : vector<128x1xf32> to vector<128x32xf32>
      %52 = arith.divf %49, %51 : vector<128x32xf32>
      %c0_36 = arith.constant 0 : index
      %c0_37 = arith.constant 0 : index
      %c0_38 = arith.constant 0 : index
      %c0_39 = arith.constant 0 : index
      %53 = vector.load %arg8[%c0_36, %c0_37, %c0_38, %c0_39] : memref<1x1x128x32xf32, #tpu.memory_space<vmem>>, vector<1x1x128x32xf32>
      %54 = vector.shape_cast %53 : vector<1x1x128x32xf32> to vector<128x32xf32>
      %55 = vector.shape_cast %52 : vector<128x32xf32> to vector<1x1x128x32xf32>
      tpu.vector_store %arg8[%c0_36, %c0_37, %c0_38, %c0_39], %55 {strides = array<i32>} : memref<1x1x128x32xf32, #tpu.memory_space<vmem>>, vector<1x1x128x32xf32>,
    } else {
    }
    return
  }
  func.func @transform_0(%arg0: i32, %arg1: i32, %arg2: i32, %arg3: i32) -> (i32, i32, i32) {
    %c0_i32 = arith.constant 0 : i32
    %c0_i32_0 = arith.constant 0 : i32
    %c0_i32_1 = arith.constant 0 : i32
    return %arg0, %c0_i32, %c0_i32_0 : i32, i32, i32
  }
  func.func @transform_1(%arg0: i32, %arg1: i32, %arg2: i32, %arg3: i32) -> (i32, i32, i32, i32) {
    %c0_i32 = arith.constant 0 : i32
    %c0_i32_0 = arith.constant 0 : i32
    return %arg0, %arg1, %arg2, %c0_i32 : i32, i32, i32, i32
  }
  func.func @transform_2(%arg0: i32, %arg1: i32, %arg2: i32, %arg3: i32) -> (i32, i32, i32, i32) {
    %c0_i32 = arith.constant 0 : i32
    %c0_i32_0 = arith.constant 0 : i32
    return %arg0, %arg1, %arg3, %c0_i32 : i32, i32, i32, i32
  }
  func.func @transform_3(%arg0: i32, %arg1: i32, %arg2: i32, %arg3: i32) -> (i32, i32, i32, i32) {
    %c0_i32 = arith.constant 0 : i32
    %c0_i32_0 = arith.constant 0 : i32
    return %arg0, %arg1, %arg3, %c0_i32 : i32, i32, i32, i32
  }
  func.func @transform_4(%arg0: i32, %arg1: i32, %arg2: i32, %arg3: i32) -> (i32, i32, i32, i32) {
    %c0_i32 = arith.constant 0 : i32
    %c0_i32_0 = arith.constant 0 : i32
    return %arg0, %arg1, %arg2, %c0_i32 : i32, i32, i32, i32
  }
}

</mosaic_0001>

<llo_original>
// kernel: tpu_custom_call.1
$region0: #{tpu_custom_call.1}
  #allocation0 [shape = 'u32[]', space=smem, size = 0x4, offset = 0x4, fixed_abs, tag = 'smem constant byte address 0x4 - core index']
  #allocation1 [shape = 'u32[72,128]{1,0:T(1,128)}', space=vmem, size = 0x9000, scoped, tag = 'internal scratch']
  #allocation2 [shape = 'f32[128,128]{1,0:T(8,128)}', space=vmem, size = 0x10000, scoped, tag = 'scratch operand']
  #allocation3 [shape = 'f32[128,128]{1,0:T(8,128)}', space=vmem, size = 0x10000, scoped, tag = 'scratch operand']
  #allocation4 [shape = 'f32[128,32]{1,0:T(8,128)}', space=vmem, size = 0x10000, scoped, tag = 'scratch operand']
  %s0 = inlined_call_operand.vmem [shape: f32[2,1,128], index: 0, kind: input, shape index: {}]
  %s1 = inlined_call_operand.vmem [shape: f32[2,4,128,32], index: 1, kind: input, shape index: {}]
  %s2 = inlined_call_operand.vmem [shape: f32[2,4,128,32], index: 2, kind: input, shape index: {}]
  %s3 = inlined_call_operand.vmem [shape: f32[2,4,128,32], index: 3, kind: input, shape index: {}]
  %s4 = inlined_call_operand.vmem [shape: f32[2,4,128,32], index: 4, kind: output, shape index: {}]
  %s5 = sld [smem:[#allocation0]]
  $region57: #{tpu_custom_call.1} parent=0
    _
  %s7 = ssub.s32 1, %s5
  %s8 = scalar_select 0, %s7, %s5
  loop: start=0, step=1, limit=10
  $region2: #{tpu_custom_call.1} parent=0 // loop_pre_header
    _
  $region3: #{tpu_custom_call.1} parent=0 // loop_header
    %s10 = sphi 0, %s14
    %p11 = scmp.ge.s32.totalorder %s10, 10
    %s17 = sphi 0, %s43
    %s18 = sphi 0, %s39
    %s19 = sphi 0, %s35
    %s20 = sphi 0, %s31
    %s21 = sphi 0, %s17
    %s22 = sphi 0, %s18
    %s23 = sphi 0, %s19
    %s24 = sphi 0, %s20
    %s25 = sphi 0, %s21
    %s26 = sphi 0, %s22
    %s27 = sphi 0, %s23
    %s28 = sphi 0, %s24
    %s46 = sphi 0, %s48
    %s49 = sphi 0, %s46
    %s50 = sphi 0, %s49
    %s66 = sphi 0, %s50
    %s76 = sphi 0, %s78
    %s79 = sphi 0, %s76
    %s80 = sphi 0, %s79
    %s96 = sphi 0, %s80
    %s106 = sphi 0, %s108
    %s109 = sphi 0, %s106
    %s110 = sphi 0, %s109
    %s126 = sphi 0, %s110
    %s136 = sphi 0, %s138
    %s139 = sphi 0, %s136
    %s140 = sphi 0, %s139
    %s156 = sphi 0, %s140
    %s166 = sphi 0, %s168
    %s169 = sphi 0, %s166
    %s170 = sphi 0, %s169
    %s186 = sphi 0, %s170
  $region4: #{tpu_custom_call.1} parent=0 // loop_header_branch
    %13 = sbr.rel (%p11) target = $region8
  $region5: #{tpu_custom_call.1} parent=0 // loop_body
    %s15 = ssub.s32 %s10, 1
    %s16 = ssub.s32 %s10, 2
    %s29 = sadd.s32 1, %s20
    %p30 = scmp.ge.s32.totalorder %s29, 1
    %s31 = scalar_select %p30, 0, %s29
    %s32 = sadd.s32 1, %s19
    %s33 = scalar_select %p30, %s32, %s19
    %p34 = scmp.ge.s32.totalorder %s33, 1
    %s35 = scalar_select %p34, 0, %s33
    %s36 = sadd.s32 1, %s18
    %s37 = scalar_select %p34, %s36, %s18
    %p38 = scmp.ge.s32.totalorder %s37, 4
    %s39 = scalar_select %p38, 0, %s37
    %s40 = sadd.s32 1, %s17
    %s41 = scalar_select %p38, %s40, %s17
    %p42 = scmp.ge.s32.totalorder %s41, 2
    %s43 = scalar_select %p42, 0, %s41
    %s44 = ssub.s32 %s17, %s43
    %p45 = scmp.eq.s32.totalorder %s44, 0
    %s47 = sadd.s32 %s46, 1
    %s48 = scalar_select %p45, %s46, %s47
    %p51 = pneg %p45
    %p52 = scmp.eq.s32.totalorder %s10, 7
    %p53 = por %p51, %p52
    %p54 = scmp.ne.s32.totalorder %s46, %s49
    %p55 = scmp.eq.s32.totalorder %s10, 0
    %p56 = por %p54, %p55
    %p57 = scmp.ne.s32.totalorder %s46, %s49
    %p58 = scmp.eq.s32.totalorder %s15, 7
    %p59 = por %p57, %p58
    %p60 = scmp.ne.s32.totalorder %s49, %s50
    %p61 = scmp.eq.s32.totalorder %s15, 0
    %p62 = por %p60, %p61
    %p63 = scmp.ne.s32.totalorder %s49, %s50
    %p64 = scmp.eq.s32.totalorder %s16, 7
    %p65 = por %p63, %p64
    %p67 = scmp.ne.s32.totalorder %s50, %s66
    %p68 = scmp.eq.s32.totalorder %s16, 0
    %p69 = por %p67, %p68
    %s70 = ssub.s32 %s17, %s43
    %s71 = ssub.s32 %s18, %s39
    %s72 = sor.u32 %s70, %s71
    %s73 = ssub.s32 %s19, %s35
    %s74 = sor.u32 %s72, %s73
    %p75 = scmp.eq.s32.totalorder %s74, 0
    %s77 = sadd.s32 %s76, 1
    %s78 = scalar_select %p75, %s76, %s77
    %p81 = pneg %p75
    %p82 = scmp.eq.s32.totalorder %s10, 7
    %p83 = por %p81, %p82
    %p84 = scmp.ne.s32.totalorder %s76, %s79
    %p85 = scmp.eq.s32.totalorder %s10, 0
    %p86 = por %p84, %p85
    %p87 = scmp.ne.s32.totalorder %s76, %s79
    %p88 = scmp.eq.s32.totalorder %s15, 7
    %p89 = por %p87, %p88
    %p90 = scmp.ne.s32.totalorder %s79, %s80
    %p91 = scmp.eq.s32.totalorder %s15, 0
    %p92 = por %p90, %p91
    %p93 = scmp.ne.s32.totalorder %s79, %s80
    %p94 = scmp.eq.s32.totalorder %s16, 7
    %p95 = por %p93, %p94
    %p97 = scmp.ne.s32.totalorder %s80, %s96
    %p98 = scmp.eq.s32.totalorder %s16, 0
    %p99 = por %p97, %p98
    %s100 = ssub.s32 %s17, %s43
    %s101 = ssub.s32 %s18, %s39
    %s102 = sor.u32 %s100, %s101
    %s103 = ssub.s32 %s20, %s31
    %s104 = sor.u32 %s102, %s103
    %p105 = scmp.eq.s32.totalorder %s104, 0
    %s107 = sadd.s32 %s106, 1
    %s108 = scalar_select %p105, %s106, %s107
    %p111 = pneg %p105
    %p112 = scmp.eq.s32.totalorder %s10, 7
    %p113 = por %p111, %p112
    %p114 = scmp.ne.s32.totalorder %s106, %s109
    %p115 = scmp.eq.s32.totalorder %s10, 0
    %p116 = por %p114, %p115
    %p117 = scmp.ne.s32.totalorder %s106, %s109
    %p118 = scmp.eq.s32.totalorder %s15, 7
    %p119 = por %p117, %p118
    %p120 = scmp.ne.s32.totalorder %s109, %s110
    %p121 = scmp.eq.s32.totalorder %s15, 0
    %p122 = por %p120, %p121
    %p123 = scmp.ne.s32.totalorder %s109, %s110
    %p124 = scmp.eq.s32.totalorder %s16, 7
    %p125 = por %p123, %p124
    %p127 = scmp.ne.s32.totalorder %s110, %s126
    %p128 = scmp.eq.s32.totalorder %s16, 0
    %p129 = por %p127, %p128
    %s130 = ssub.s32 %s17, %s43
    %s131 = ssub.s32 %s18, %s39
    %s132 = sor.u32 %s130, %s131
    %s133 = ssub.s32 %s20, %s31
    %s134 = sor.u32 %s132, %s133
    %p135 = scmp.eq.s32.totalorder %s134, 0
    %s137 = sadd.s32 %s136, 1
    %s138 = scalar_select %p135, %s136, %s137
    %p141 = pneg %p135
    %p142 = scmp.eq.s32.totalorder %s10, 7
    %p143 = por %p141, %p142
    %p144 = scmp.ne.s32.totalorder %s136, %s139
    %p145 = scmp.eq.s32.totalorder %s10, 0
    %p146 = por %p144, %p145
    %p147 = scmp.ne.s32.totalorder %s136, %s139
    %p148 = scmp.eq.s32.totalorder %s15, 7
    %p149 = por %p147, %p148
    %p150 = scmp.ne.s32.totalorder %s139, %s140
    %p151 = scmp.eq.s32.totalorder %s15, 0
    %p152 = por %p150, %p151
    %p153 = scmp.ne.s32.totalorder %s139, %s140
    %p154 = scmp.eq.s32.totalorder %s16, 7
    %p155 = por %p153, %p154
    %p157 = scmp.ne.s32.totalorder %s140, %s156
    %p158 = scmp.eq.s32.totalorder %s16, 0
    %p159 = por %p157, %p158
    %s160 = ssub.s32 %s17, %s43
    %s161 = ssub.s32 %s18, %s39
    %s162 = sor.u32 %s160, %s161
    %s163 = ssub.s32 %s19, %s35
    %s164 = sor.u32 %s162, %s163
    %p165 = scmp.eq.s32.totalorder %s164, 0
    %s167 = sadd.s32 %s166, 1
    %s168 = scalar_select %p165, %s166, %s167
    %p171 = pneg %p165
    %p172 = scmp.eq.s32.totalorder %s10, 7
    %p173 = por %p171, %p172
    %p174 = scmp.ne.s32.totalorder %s166, %s169
    %p175 = scmp.eq.s32.totalorder %s10, 0
    %p176 = por %p174, %p175
    %p177 = scmp.ne.s32.totalorder %s166, %s169
    %p178 = scmp.eq.s32.totalorder %s15, 7
    %p179 = por %p177, %p178
    %p180 = scmp.ne.s32.totalorder %s169, %s170
    %p181 = scmp.eq.s32.totalorder %s15, 0
    %p182 = por %p180, %p181
    %p183 = scmp.ne.s32.totalorder %s169, %s170
    %p184 = scmp.eq.s32.totalorder %s16, 7
    %p185 = por %p183, %p184
    %p187 = scmp.ne.s32.totalorder %s170, %s186
    %p188 = scmp.eq.s32.totalorder %s16, 0
    %p189 = por %p187, %p188
    %p190 = scmp.le.s32.totalorder 1, %s10
    %p191 = scmp.lt.s32.totalorder %s10, 9
    %p192 = pnand %p190, %p191
    %p193 = pneg %p192
    // Predicated region
    $region9: #{tpu_custom_call.1} parent=5 // pred_check
      _
    $region10: #{tpu_custom_call.1} parent=5 // pred_check_branch
      %195 = sbr.rel (%p192) target = $region12
    $region11: #{tpu_custom_call.1} parent=5 // pred_region
      %s196 = ssub.s32 %s10, 1
    $region12: #{tpu_custom_call.1} parent=5 // pred_fallthru
      _
    %p197 = scmp.lt.s32.totalorder %s10, 8
    // Predicated region
    $region13: #{tpu_custom_call.1} parent=5 // pred_check
      %p198 = pneg %p197
    $region14: #{tpu_custom_call.1} parent=5 // pred_check_branch
      %200 = sbr.rel (%p198) target = $region16
    $region15: #{tpu_custom_call.1} parent=5 // pred_region
      // Predicated region
      $region17: #{tpu_custom_call.1} parent=15 // pred_check
        %p201 = pneg %p56
      $region18: #{tpu_custom_call.1} parent=15 // pred_check_branch
        %203 = sbr.rel (%p201) target = $region20
      $region19: #{tpu_custom_call.1} parent=15 // pred_region
        %p204 = scmp.lt.s32.totalorder %s17, 1
        %s205 = scalar_select %p204, %s17, 1
        %s206 = scalar_lea.vmem %s0, %s205
      $region20: #{tpu_custom_call.1} parent=15 // pred_fallthru
        _
      // Predicated region
      $region21: #{tpu_custom_call.1} parent=15 // pred_check
        %p207 = pneg %p86
      $region22: #{tpu_custom_call.1} parent=15 // pred_check_branch
        %209 = sbr.rel (%p207) target = $region24
      $region23: #{tpu_custom_call.1} parent=15 // pred_region
        %s210 = smul.u32 16, %s19
        %p211 = scmp.lt.s32.totalorder %s17, 1
        %s212 = scalar_select %p211, %s17, 1
        %p213 = scmp.lt.s32.totalorder %s18, 3
        %s214 = scalar_select %p213, %s18, 3
        %p215 = scmp.lt.s32.totalorder %s210, 15
        %s216 = scalar_select %p215, %s210, 15
        %s217 = smul.addr %s214, 16
        %s218 = sadd.s32 %s216, %s217
        %s219 = smul.addr %s212, 64
        %s220 = sadd.s32 %s218, %s219
        %s221 = smul.addr %s220, 8
        %s222 = scalar_lea.vmem %s1, %s221
        %s223 = smul.u32 16, %s19
      $region24: #{tpu_custom_call.1} parent=15 // pred_fallthru
        _
      // Predicated region
      $region25: #{tpu_custom_call.1} parent=15 // pred_check
        %p224 = pneg %p116
      $region26: #{tpu_custom_call.1} parent=15 // pred_check_branch
        %226 = sbr.rel (%p224) target = $region28
      $region27: #{tpu_custom_call.1} parent=15 // pred_region
        %s227 = smul.u32 16, %s20
        %p228 = scmp.lt.s32.totalorder %s17, 1
        %s229 = scalar_select %p228, %s17, 1
        %p230 = scmp.lt.s32.totalorder %s18, 3
        %s231 = scalar_select %p230, %s18, 3
        %p232 = scmp.lt.s32.totalorder %s227, 15
        %s233 = scalar_select %p232, %s227, 15
        %s234 = smul.addr %s231, 16
        %s235 = sadd.s32 %s233, %s234
        %s236 = smul.addr %s229, 64
        %s237 = sadd.s32 %s235, %s236
        %s238 = smul.addr %s237, 8
        %s239 = scalar_lea.vmem %s2, %s238
        %s240 = smul.u32 16, %s20
      $region28: #{tpu_custom_call.1} parent=15 // pred_fallthru
        _
      // Predicated region
      $region29: #{tpu_custom_call.1} parent=15 // pred_check
        %p241 = pneg %p146
      $region30: #{tpu_custom_call.1} parent=15 // pred_check_branch
        %243 = sbr.rel (%p241) target = $region32
      $region31: #{tpu_custom_call.1} parent=15 // pred_region
        %s244 = smul.u32 16, %s20
        %p245 = scmp.lt.s32.totalorder %s17, 1
        %s246 = scalar_select %p245, %s17, 1
        %p247 = scmp.lt.s32.totalorder %s18, 3
        %s248 = scalar_select %p247, %s18, 3
        %p249 = scmp.lt.s32.totalorder %s244, 15
        %s250 = scalar_select %p249, %s244, 15
        %s251 = smul.addr %s248, 16
        %s252 = sadd.s32 %s250, %s251
        %s253 = smul.addr %s246, 64
        %s254 = sadd.s32 %s252, %s253
        %s255 = smul.addr %s254, 8
        %s256 = scalar_lea.vmem %s3, %s255
        %s257 = smul.u32 16, %s20
      $region32: #{tpu_custom_call.1} parent=15 // pred_fallthru
        _
    $region16: #{tpu_custom_call.1} parent=5 // pred_fallthru
      _
    %p258 = scmp.le.s32.totalorder 1, %s10
    %p259 = scmp.lt.s32.totalorder %s10, 9
    %p260 = pnand %p258, %p259
    %p261 = pneg %p260
    // Predicated region
    $region33: #{tpu_custom_call.1} parent=5 // pred_check
      _
    $region34: #{tpu_custom_call.1} parent=5 // pred_check_branch
      %263 = sbr.rel (%p260) target = $region36
    $region35: #{tpu_custom_call.1} parent=5 // pred_region
      %s264 = ssub.s32 %s10, 1
      %p265 = scmp.lt.s32.totalorder %s21, 1
      %s266 = scalar_select %p265, %s21, 1
      %s267 = scalar_lea.vmem %s0, %s266
      %p268 = pneg %p62
      %p269 = pneg %p59
      %s270 = smul.u32 16, %s23
      %p271 = scmp.lt.s32.totalorder %s21, 1
      %s272 = scalar_select %p271, %s21, 1
      %p273 = scmp.lt.s32.totalorder %s22, 3
      %s274 = scalar_select %p273, %s22, 3
      %p275 = scmp.lt.s32.totalorder %s270, 15
      %s276 = scalar_select %p275, %s270, 15
      %s277 = smul.addr %s274, 16
      %s278 = sadd.s32 %s276, %s277
      %s279 = smul.addr %s272, 64
      %s280 = sadd.s32 %s278, %s279
      %s281 = smul.addr %s280, 8
      %s282 = scalar_lea.vmem %s1, %s281
      %p283 = pneg %p92
      %p284 = pneg %p89
      %s285 = smul.u32 16, %s24
      %p286 = scmp.lt.s32.totalorder %s21, 1
      %s287 = scalar_select %p286, %s21, 1
      %p288 = scmp.lt.s32.totalorder %s22, 3
      %s289 = scalar_select %p288, %s22, 3
      %p290 = scmp.lt.s32.totalorder %s285, 15
      %s291 = scalar_select %p290, %s285, 15
      %s292 = smul.addr %s289, 16
      %s293 = sadd.s32 %s291, %s292
      %s294 = smul.addr %s287, 64
      %s295 = sadd.s32 %s293, %s294
      %s296 = smul.addr %s295, 8
      %s297 = scalar_lea.vmem %s2, %s296
      %p298 = pneg %p122
      %p299 = pneg %p119
      %s300 = smul.u32 16, %s24
      %p301 = scmp.lt.s32.totalorder %s21, 1
      %s302 = scalar_select %p301, %s21, 1
      %p303 = scmp.lt.s32.totalorder %s22, 3
      %s304 = scalar_select %p303, %s22, 3
      %p305 = scmp.lt.s32.totalorder %s300, 15
      %s306 = scalar_select %p305, %s300, 15
      %s307 = smul.addr %s304, 16
      %s308 = sadd.s32 %s306, %s307
      %s309 = smul.addr %s302, 64
      %s310 = sadd.s32 %s308, %s309
      %s311 = smul.addr %s310, 8
      %s312 = scalar_lea.vmem %s3, %s311
      %p313 = pneg %p152
      %p314 = pneg %p149
      %p315 = pneg %p182
      %p316 = pneg %p179
      %s317 = smul.u32 16, %s23
      %p318 = scmp.lt.s32.totalorder %s21, 1
      %s319 = scalar_select %p318, %s21, 1
      %p320 = scmp.lt.s32.totalorder %s22, 3
      %s321 = scalar_select %p320, %s22, 3
      %p322 = scmp.lt.s32.totalorder %s317, 15
      %s323 = scalar_select %p322, %s317, 15
      %s324 = smul.addr %s321, 16
      %s325 = sadd.s32 %s323, %s324
      %s326 = smul.addr %s319, 64
      %s327 = sadd.s32 %s325, %s326
      %s328 = smul.addr %s327, 8
      %s329 = scalar_lea.vmem %s4, %s328
      %p330 = scmp.lt.s32.totalorder %s21, 1
      %s331 = scalar_select %p330, %s21, 1
      %s332 = scalar_lea.vmem %s0, %s331
      %s333 = smul.u32 16, %s23
      %p334 = scmp.lt.s32.totalorder %s21, 1
      %s335 = scalar_select %p334, %s21, 1
      %p336 = scmp.lt.s32.totalorder %s22, 3
      %s337 = scalar_select %p336, %s22, 3
      %p338 = scmp.lt.s32.totalorder %s333, 15
      %s339 = scalar_select %p338, %s333, 15
      %s340 = smul.addr %s337, 16
      %s341 = sadd.s32 %s339, %s340
      %s342 = smul.addr %s335, 64
      %s343 = sadd.s32 %s341, %s342
      %s344 = smul.addr %s343, 8
      %s345 = scalar_lea.vmem %s1, %s344
      %s346 = smul.u32 16, %s23
      %s347 = smul.u32 16, %s24
      %p348 = scmp.lt.s32.totalorder %s21, 1
      %s349 = scalar_select %p348, %s21, 1
      %p350 = scmp.lt.s32.totalorder %s22, 3
      %s351 = scalar_select %p350, %s22, 3
      %p352 = scmp.lt.s32.totalorder %s347, 15
      %s353 = scalar_select %p352, %s347, 15
      %s354 = smul.addr %s351, 16
      %s355 = sadd.s32 %s353, %s354
      %s356 = smul.addr %s349, 64
      %s357 = sadd.s32 %s355, %s356
      %s358 = smul.addr %s357, 8
      %s359 = scalar_lea.vmem %s2, %s358
      %s360 = smul.u32 16, %s24
      %s361 = smul.u32 16, %s24
      %p362 = scmp.lt.s32.totalorder %s21, 1
      %s363 = scalar_select %p362, %s21, 1
      %p364 = scmp.lt.s32.totalorder %s22, 3
      %s365 = scalar_select %p364, %s22, 3
      %p366 = scmp.lt.s32.totalorder %s361, 15
      %s367 = scalar_select %p366, %s361, 15
      %s368 = smul.addr %s365, 16
      %s369 = sadd.s32 %s367, %s368
      %s370 = smul.addr %s363, 64
      %s371 = sadd.s32 %s369, %s370
      %s372 = smul.addr %s371, 8
      %s373 = scalar_lea.vmem %s3, %s372
      %s374 = smul.u32 16, %s24
      %s375 = smul.u32 16, %s23
      %p376 = scmp.lt.s32.totalorder %s21, 1
      %s377 = scalar_select %p376, %s21, 1
      %p378 = scmp.lt.s32.totalorder %s22, 3
      %s379 = scalar_select %p378, %s22, 3
      %p380 = scmp.lt.s32.totalorder %s375, 15
      %s381 = scalar_select %p380, %s375, 15
      %s382 = smul.addr %s379, 16
      %s383 = sadd.s32 %s381, %s382
      %s384 = smul.addr %s377, 64
      %s385 = sadd.s32 %s383, %s384
      %s386 = smul.addr %s385, 8
      %s387 = scalar_lea.vmem %s4, %s386
      %s388 = smul.u32 16, %s23
      %p389 = scmp.eq.s32.totalorder %s24, 0
      // Predicated region
      $region37: #{tpu_custom_call.1} parent=35 // pred_check
        %p390 = pneg %p389
      $region38: #{tpu_custom_call.1} parent=35 // pred_check_branch
        %392 = sbr.rel (%p390) target = $region40
      $region39: #{tpu_custom_call.1} parent=35 // pred_region
        %393 = vst [vmem:[#allocation2] sm:$0xff] -inf
        %394 = vst [vmem:[#allocation2 + $0x8] sm:$0xff] -inf
        %395 = vst [vmem:[#allocation2 + $0x10] sm:$0xff] -inf
        %396 = vst [vmem:[#allocation2 + $0x18] sm:$0xff] -inf
        %397 = vst [vmem:[#allocation2 + $0x20] sm:$0xff] -inf
        %398 = vst [vmem:[#allocation2 + $0x28] sm:$0xff] -inf
        %399 = vst [vmem:[#allocation2 + $0x30] sm:$0xff] -inf
        %400 = vst [vmem:[#allocation2 + $0x38] sm:$0xff] -inf
        %401 = vst [vmem:[#allocation2 + $0x40] sm:$0xff] -inf
        %402 = vst [vmem:[#allocation2 + $0x48] sm:$0xff] -inf
        %403 = vst [vmem:[#allocation2 + $0x50] sm:$0xff] -inf
        %404 = vst [vmem:[#allocation2 + $0x58] sm:$0xff] -inf
        %405 = vst [vmem:[#allocation2 + $0x60] sm:$0xff] -inf
        %406 = vst [vmem:[#allocation2 + $0x68] sm:$0xff] -inf
        %407 = vst [vmem:[#allocation2 + $0x70] sm:$0xff] -inf
        %408 = vst [vmem:[#allocation2 + $0x78] sm:$0xff] -inf
        %409 = vst [vmem:[#allocation3] sm:$0xff] 0.0
        %410 = vst [vmem:[#allocation3 + $0x8] sm:$0xff] 0.0
        %411 = vst [vmem:[#allocation3 + $0x10] sm:$0xff] 0.0
        %412 = vst [vmem:[#allocation3 + $0x18] sm:$0xff] 0.0
        %413 = vst [vmem:[#allocation3 + $0x20] sm:$0xff] 0.0
        %414 = vst [vmem:[#allocation3 + $0x28] sm:$0xff] 0.0
        %415 = vst [vmem:[#allocation3 + $0x30] sm:$0xff] 0.0
        %416 = vst [vmem:[#allocation3 + $0x38] sm:$0xff] 0.0
        %417 = vst [vmem:[#allocation3 + $0x40] sm:$0xff] 0.0
        %418 = vst [vmem:[#allocation3 + $0x48] sm:$0xff] 0.0
        %419 = vst [vmem:[#allocation3 + $0x50] sm:$0xff] 0.0
        %420 = vst [vmem:[#allocation3 + $0x58] sm:$0xff] 0.0
        %421 = vst [vmem:[#allocation3 + $0x60] sm:$0xff] 0.0
        %422 = vst [vmem:[#allocation3 + $0x68] sm:$0xff] 0.0
        %423 = vst [vmem:[#allocation3 + $0x70] sm:$0xff] 0.0
        %424 = vst [vmem:[#allocation3 + $0x78] sm:$0xff] 0.0
        %vm425 = vcmask 261120
        %426 = vst.msk [vmem:[#allocation4] sm:$0xff] %vm425, 0.0
        %427 = vst.msk [vmem:[#allocation4 + $0x8] sm:$0xff] %vm425, 0.0
        %428 = vst.msk [vmem:[#allocation4 + $0x10] sm:$0xff] %vm425, 0.0
        %429 = vst.msk [vmem:[#allocation4 + $0x18] sm:$0xff] %vm425, 0.0
        %430 = vst.msk [vmem:[#allocation4 + $0x20] sm:$0xff] %vm425, 0.0
        %431 = vst.msk [vmem:[#allocation4 + $0x28] sm:$0xff] %vm425, 0.0
        %432 = vst.msk [vmem:[#allocation4 + $0x30] sm:$0xff] %vm425, 0.0
        %433 = vst.msk [vmem:[#allocation4 + $0x38] sm:$0xff] %vm425, 0.0
        %434 = vst.msk [vmem:[#allocation4 + $0x40] sm:$0xff] %vm425, 0.0
        %435 = vst.msk [vmem:[#allocation4 + $0x48] sm:$0xff] %vm425, 0.0
        %436 = vst.msk [vmem:[#allocation4 + $0x50] sm:$0xff] %vm425, 0.0
        %437 = vst.msk [vmem:[#allocation4 + $0x58] sm:$0xff] %vm425, 0.0
        %438 = vst.msk [vmem:[#allocation4 + $0x60] sm:$0xff] %vm425, 0.0
        %439 = vst.msk [vmem:[#allocation4 + $0x68] sm:$0xff] %vm425, 0.0
        %440 = vst.msk [vmem:[#allocation4 + $0x70] sm:$0xff] %vm425, 0.0
        %441 = vst.msk [vmem:[#allocation4 + $0x78] sm:$0xff] %vm425, 0.0
      $region40: #{tpu_custom_call.1} parent=35 // pred_fallthru
        _
      %v442 = vld [vmem:[%s345] sm:$0xff]
      %v443 = vld [vmem:[%s345 + $0x8] sm:$0xff]
      %v444 = vld [vmem:[%s345 + $0x10] sm:$0xff]
      %v445 = vld [vmem:[%s345 + $0x18] sm:$0xff]
      %v446 = vld [vmem:[%s345 + $0x20] sm:$0xff]
      %v447 = vld [vmem:[%s345 + $0x28] sm:$0xff]
      %v448 = vld [vmem:[%s345 + $0x30] sm:$0xff]
      %v449 = vld [vmem:[%s345 + $0x38] sm:$0xff]
      %v450 = vld [vmem:[%s345 + $0x40] sm:$0xff]
      %v451 = vld [vmem:[%s345 + $0x48] sm:$0xff]
      %v452 = vld [vmem:[%s345 + $0x50] sm:$0xff]
      %v453 = vld [vmem:[%s345 + $0x58] sm:$0xff]
      %v454 = vld [vmem:[%s345 + $0x60] sm:$0xff]
      %v455 = vld [vmem:[%s345 + $0x68] sm:$0xff]
      %v456 = vld [vmem:[%s345 + $0x70] sm:$0xff]
      %v457 = vld [vmem:[%s345 + $0x78] sm:$0xff]
      %v458 = vmul.f32 %v442, 0.17677669
      %v459 = vmul.f32 %v443, 0.17677669
      %v460 = vmul.f32 %v444, 0.17677669
      %v461 = vmul.f32 %v445, 0.17677669
      %v462 = vmul.f32 %v446, 0.17677669
      %v463 = vmul.f32 %v447, 0.17677669
      %v464 = vmul.f32 %v448, 0.17677669
      %v465 = vmul.f32 %v449, 0.17677669
      %v466 = vmul.f32 %v450, 0.17677669
      %v467 = vmul.f32 %v451, 0.17677669
      %v468 = vmul.f32 %v452, 0.17677669
      %v469 = vmul.f32 %v453, 0.17677669
      %v470 = vmul.f32 %v454, 0.17677669
      %v471 = vmul.f32 %v455, 0.17677669
      %v472 = vmul.f32 %v456, 0.17677669
      %v473 = vmul.f32 %v457, 0.17677669
      %v474 = vld [vmem:[%s359] sm:$0xff]
      %v475 = vld [vmem:[%s359 + $0x8] sm:$0xff]
      %v476 = vld [vmem:[%s359 + $0x10] sm:$0xff]
      %v477 = vld [vmem:[%s359 + $0x18] sm:$0xff]
      %v478 = vld [vmem:[%s359 + $0x20] sm:$0xff]
      %v479 = vld [vmem:[%s359 + $0x28] sm:$0xff]
      %v480 = vld [vmem:[%s359 + $0x30] sm:$0xff]
      %v481 = vld [vmem:[%s359 + $0x38] sm:$0xff]
      %v482 = vld [vmem:[%s359 + $0x40] sm:$0xff]
      %v483 = vld [vmem:[%s359 + $0x48] sm:$0xff]
      %v484 = vld [vmem:[%s359 + $0x50] sm:$0xff]
      %v485 = vld [vmem:[%s359 + $0x58] sm:$0xff]
      %v486 = vld [vmem:[%s359 + $0x60] sm:$0xff]
      %v487 = vld [vmem:[%s359 + $0x68] sm:$0xff]
      %v488 = vld [vmem:[%s359 + $0x70] sm:$0xff]
      %v489 = vld [vmem:[%s359 + $0x78] sm:$0xff]
      %s490 = smul.u32 %s24, 128
      %s491 = sshra.s32 %s490, 7
      %s492 = sand.u32 %s490, 127
      %s493 = scalar_lea.vmem %s332, %s491
      %v494 = vld [vmem:[%s493] sm:$0x1]
      %v496 = vperm.slane %v494, 0
      %vm498 = vcmask 261120
      %v500 = vsel %vm498, %v458, 0
      %v503 = vsel %vm498, %v459, 0
      %v506 = vsel %vm498, %v460, 0
      %v509 = vsel %vm498, %v461, 0
      %v512 = vsel %vm498, %v462, 0
      %v515 = vsel %vm498, %v463, 0
      %v518 = vsel %vm498, %v464, 0
      %v521 = vsel %vm498, %v465, 0
      %v524 = vsel %vm498, %v466, 0
      %v527 = vsel %vm498, %v467, 0
      %v530 = vsel %vm498, %v468, 0
      %v533 = vsel %vm498, %v469, 0
      %v536 = vsel %vm498, %v470, 0
      %v539 = vsel %vm498, %v471, 0
      %v542 = vsel %vm498, %v472, 0
      %v545 = vsel %vm498, %v473, 0
      %v548 = vsel %vm498, %v474, 0
      %v551 = vsel %vm498, %v475, 0
      %v554 = vsel %vm498, %v476, 0
      %v557 = vsel %vm498, %v477, 0
      %v560 = vsel %vm498, %v478, 0
      %v563 = vsel %vm498, %v479, 0
      %v566 = vsel %vm498, %v480, 0
      %v569 = vsel %vm498, %v481, 0
      %v572 = vsel %vm498, %v482, 0
      %v575 = vsel %vm498, %v483, 0
      %v578 = vsel %vm498, %v484, 0
      %v581 = vsel %vm498, %v485, 0
      %v584 = vsel %vm498, %v486, 0
      %v587 = vsel %vm498, %v487, 0
      %v590 = vsel %vm498, %v488, 0
      %v593 = vsel %vm498, %v489, 0
      %595 = vmatpush.xpose.msra.mxu0 %v593
      %596 = vmatpush.xpose.msra.mxu0 %v590
      %597 = vmatpush.xpose.msra.mxu0 %v587
      %598 = vmatpush.xpose.msra.mxu0 %v584
      %599 = vmatpush.xpose.msra.mxu0 %v581
      %600 = vmatpush.xpose.msra.mxu0 %v578
      %601 = vmatpush.xpose.msra.mxu0 %v575
      %602 = vmatpush.xpose.msra.mxu0 %v572
      %603 = vmatpush.xpose.msra.mxu0 %v569
      %604 = vmatpush.xpose.msra.mxu0 %v566
      %605 = vmatpush.xpose.msra.mxu0 %v563
      %606 = vmatpush.xpose.msra.mxu0 %v560
      %607 = vmatpush.xpose.msra.mxu0 %v557
      %608 = vmatpush.xpose.msra.mxu0 %v554
      %609 = vmatpush.xpose.msra.mxu0 %v551
      %610 = vmatpush.xpose.msra.mxu0 %v548
      %611 = vmatmul.f32.gmra.mxu0 %v500
      %v612 = vpop.f32.mrf.mxu0
      %v613 = vadd.f32 %v496, %v612
      %614 = vmatmul.f32.gmra.mxu0 %v503
      %v615 = vpop.f32.mrf.mxu0
      %v616 = vadd.f32 %v496, %v615
      %617 = vmatmul.f32.gmra.mxu0 %v506
      %v618 = vpop.f32.mrf.mxu0
      %v619 = vadd.f32 %v496, %v618
      %620 = vmatmul.f32.gmra.mxu0 %v509
      %v621 = vpop.f32.mrf.mxu0
      %v622 = vadd.f32 %v496, %v621
      %623 = vmatmul.f32.gmra.mxu0 %v512
      %v624 = vpop.f32.mrf.mxu0
      %v625 = vadd.f32 %v496, %v624
      %626 = vmatmul.f32.gmra.mxu0 %v515
      %v627 = vpop.f32.mrf.mxu0
      %v628 = vadd.f32 %v496, %v627
      %629 = vmatmul.f32.gmra.mxu0 %v518
      %v630 = vpop.f32.mrf.mxu0
      %v631 = vadd.f32 %v496, %v630
      %632 = vmatmul.f32.gmra.mxu0 %v521
      %v633 = vpop.f32.mrf.mxu0
      %v634 = vadd.f32 %v496, %v633
      %635 = vmatmul.f32.gmra.mxu0 %v524
      %v636 = vpop.f32.mrf.mxu0
      %v637 = vadd.f32 %v496, %v636
      %638 = vmatmul.f32.gmra.mxu0 %v527
      %v639 = vpop.f32.mrf.mxu0
      %v640 = vadd.f32 %v496, %v639
      %641 = vmatmul.f32.gmra.mxu0 %v530
      %v642 = vpop.f32.mrf.mxu0
      %v643 = vadd.f32 %v496, %v642
      %644 = vmatmul.f32.gmra.mxu0 %v533
      %v645 = vpop.f32.mrf.mxu0
      %v646 = vadd.f32 %v496, %v645
      %647 = vmatmul.f32.gmra.mxu0 %v536
      %v648 = vpop.f32.mrf.mxu0
      %v649 = vadd.f32 %v496, %v648
      %650 = vmatmul.f32.gmra.mxu0 %v539
      %v651 = vpop.f32.mrf.mxu0
      %v652 = vadd.f32 %v496, %v651
      %653 = vmatmul.f32.gmra.mxu0 %v542
      %v654 = vpop.f32.mrf.mxu0
      %v655 = vadd.f32 %v496, %v654
      %656 = vmatmul.f32.gmra.mxu0 %v545
      %v657 = vpop.f32.mrf.mxu0
      %v658 = vadd.f32 %v496, %v657
      %659 = vdwg.mxu0
      %v660 = vld [vmem:[#allocation2] sm:$0xff]
      %v661 = vld [vmem:[#allocation2 + $0x8] sm:$0xff]
      %v662 = vld [vmem:[#allocation2 + $0x10] sm:$0xff]
      %v663 = vld [vmem:[#allocation2 + $0x18] sm:$0xff]
      %v664 = vld [vmem:[#allocation2 + $0x20] sm:$0xff]
      %v665 = vld [vmem:[#allocation2 + $0x28] sm:$0xff]
      %v666 = vld [vmem:[#allocation2 + $0x30] sm:$0xff]
      %v667 = vld [vmem:[#allocation2 + $0x38] sm:$0xff]
      %v668 = vld [vmem:[#allocation2 + $0x40] sm:$0xff]
      %v669 = vld [vmem:[#allocation2 + $0x48] sm:$0xff]
      %v670 = vld [vmem:[#allocation2 + $0x50] sm:$0xff]
      %v671 = vld [vmem:[#allocation2 + $0x58] sm:$0xff]
      %v672 = vld [vmem:[#allocation2 + $0x60] sm:$0xff]
      %v673 = vld [vmem:[#allocation2 + $0x68] sm:$0xff]
      %v674 = vld [vmem:[#allocation2 + $0x70] sm:$0xff]
      %v675 = vld [vmem:[#allocation2 + $0x78] sm:$0xff]
      %676 = vmax.xlane.f32.xlu0 %v613
      %v677 = vpop.xlane.xlu0 %676
      %678 = vmax.xlane.f32.xlu0 %v616
      %v679 = vpop.xlane.xlu0 %678
      %680 = vmax.xlane.f32.xlu0 %v619
      %v681 = vpop.xlane.xlu0 %680
      %682 = vmax.xlane.f32.xlu0 %v622
      %v683 = vpop.xlane.xlu0 %682
      %684 = vmax.xlane.f32.xlu0 %v625
      %v685 = vpop.xlane.xlu0 %684
      %686 = vmax.xlane.f32.xlu0 %v628
      %v687 = vpop.xlane.xlu0 %686
      %688 = vmax.xlane.f32.xlu0 %v631
      %v689 = vpop.xlane.xlu0 %688
      %690 = vmax.xlane.f32.xlu0 %v634
      %v691 = vpop.xlane.xlu0 %690
      %692 = vmax.xlane.f32.xlu0 %v637
      %v693 = vpop.xlane.xlu0 %692
      %694 = vmax.xlane.f32.xlu0 %v640
      %v695 = vpop.xlane.xlu0 %694
      %696 = vmax.xlane.f32.xlu0 %v643
      %v697 = vpop.xlane.xlu0 %696
      %698 = vmax.xlane.f32.xlu0 %v646
      %v699 = vpop.xlane.xlu0 %698
      %700 = vmax.xlane.f32.xlu0 %v649
      %v701 = vpop.xlane.xlu0 %700
      %702 = vmax.xlane.f32.xlu0 %v652
      %v703 = vpop.xlane.xlu0 %702
      %704 = vmax.xlane.f32.xlu0 %v655
      %v705 = vpop.xlane.xlu0 %704
      %706 = vmax.xlane.f32.xlu0 %v658
      %v707 = vpop.xlane.xlu0 %706
      %v708 = vmax.f32 %v660, %v677
      %v709 = vmax.f32 %v661, %v679
      %v710 = vmax.f32 %v662, %v681
      %v711 = vmax.f32 %v663, %v683
      %v712 = vmax.f32 %v664, %v685
      %v713 = vmax.f32 %v665, %v687
      %v714 = vmax.f32 %v666, %v689
      %v715 = vmax.f32 %v667, %v691
      %v716 = vmax.f32 %v668, %v693
      %v717 = vmax.f32 %v669, %v695
      %v718 = vmax.f32 %v670, %v697
      %v719 = vmax.f32 %v671, %v699
      %v720 = vmax.f32 %v672, %v701
      %v721 = vmax.f32 %v673, %v703
      %v722 = vmax.f32 %v674, %v705
      %v723 = vmax.f32 %v675, %v707
      %v724 = vsub.f32 %v660, %v708
      %v725 = vsub.f32 %v661, %v709
      %v726 = vsub.f32 %v662, %v710
      %v727 = vsub.f32 %v663, %v711
      %v728 = vsub.f32 %v664, %v712
      %v729 = vsub.f32 %v665, %v713
      %v730 = vsub.f32 %v666, %v714
      %v731 = vsub.f32 %v667, %v715
      %v732 = vsub.f32 %v668, %v716
      %v733 = vsub.f32 %v669, %v717
      %v734 = vsub.f32 %v670, %v718
      %v735 = vsub.f32 %v671, %v719
      %v736 = vsub.f32 %v672, %v720
      %v737 = vsub.f32 %v673, %v721
      %v738 = vsub.f32 %v674, %v722
      %v739 = vsub.f32 %v675, %v723
      %v740 = vmul.f32 %v724, 1.442695
      %v741 = vpow.pop %v740
      %v742 = vmul.f32 %v725, 1.442695
      %v743 = vpow.pop %v742
      %v744 = vmul.f32 %v726, 1.442695
      %v745 = vpow.pop %v744
      %v746 = vmul.f32 %v727, 1.442695
      %v747 = vpow.pop %v746
      %v748 = vmul.f32 %v728, 1.442695
      %v749 = vpow.pop %v748
      %v750 = vmul.f32 %v729, 1.442695
      %v751 = vpow.pop %v750
      %v752 = vmul.f32 %v730, 1.442695
      %v753 = vpow.pop %v752
      %v754 = vmul.f32 %v731, 1.442695
      %v755 = vpow.pop %v754
      %v756 = vmul.f32 %v732, 1.442695
      %v757 = vpow.pop %v756
      %v758 = vmul.f32 %v733, 1.442695
      %v759 = vpow.pop %v758
      %v760 = vmul.f32 %v734, 1.442695
      %v761 = vpow.pop %v760
      %v762 = vmul.f32 %v735, 1.442695
      %v763 = vpow.pop %v762
      %v764 = vmul.f32 %v736, 1.442695
      %v765 = vpow.pop %v764
      %v766 = vmul.f32 %v737, 1.442695
      %v767 = vpow.pop %v766
      %v768 = vmul.f32 %v738, 1.442695
      %v769 = vpow.pop %v768
      %v770 = vmul.f32 %v739, 1.442695
      %v771 = vpow.pop %v770
      %773 = vset.pattern.permute.xlu0 0
      %774 = vperm.xlu0 %773, %v708
      %v775 = vpop.permute.xlu0 %774
      %778 = vset.pattern.permute.xlu0 0
      %779 = vperm.xlu0 %778, %v709
      %v780 = vpop.permute.xlu0 %779
      %783 = vset.pattern.permute.xlu0 0
      %784 = vperm.xlu0 %783, %v710
      %v785 = vpop.permute.xlu0 %784
      %788 = vset.pattern.permute.xlu0 0
      %789 = vperm.xlu0 %788, %v711
      %v790 = vpop.permute.xlu0 %789
      %793 = vset.pattern.permute.xlu0 0
      %794 = vperm.xlu0 %793, %v712
      %v795 = vpop.permute.xlu0 %794
      %798 = vset.pattern.permute.xlu0 0
      %799 = vperm.xlu0 %798, %v713
      %v800 = vpop.permute.xlu0 %799
      %803 = vset.pattern.permute.xlu0 0
      %804 = vperm.xlu0 %803, %v714
      %v805 = vpop.permute.xlu0 %804
      %808 = vset.pattern.permute.xlu0 0
      %809 = vperm.xlu0 %808, %v715
      %v810 = vpop.permute.xlu0 %809
      %813 = vset.pattern.permute.xlu0 0
      %814 = vperm.xlu0 %813, %v716
      %v815 = vpop.permute.xlu0 %814
      %818 = vset.pattern.permute.xlu0 0
      %819 = vperm.xlu0 %818, %v717
      %v820 = vpop.permute.xlu0 %819
      %823 = vset.pattern.permute.xlu0 0
      %824 = vperm.xlu0 %823, %v718
      %v825 = vpop.permute.xlu0 %824
      %828 = vset.pattern.permute.xlu0 0
      %829 = vperm.xlu0 %828, %v719
      %v830 = vpop.permute.xlu0 %829
      %833 = vset.pattern.permute.xlu0 0
      %834 = vperm.xlu0 %833, %v720
      %v835 = vpop.permute.xlu0 %834
      %838 = vset.pattern.permute.xlu0 0
      %839 = vperm.xlu0 %838, %v721
      %v840 = vpop.permute.xlu0 %839
      %843 = vset.pattern.permute.xlu0 0
      %844 = vperm.xlu0 %843, %v722
      %v845 = vpop.permute.xlu0 %844
      %848 = vset.pattern.permute.xlu0 0
      %849 = vperm.xlu0 %848, %v723
      %v850 = vpop.permute.xlu0 %849
      %v852 = vsub.f32 %v613, %v775
      %v853 = vsub.f32 %v616, %v780
      %v854 = vsub.f32 %v619, %v785
      %v855 = vsub.f32 %v622, %v790
      %v856 = vsub.f32 %v625, %v795
      %v857 = vsub.f32 %v628, %v800
      %v858 = vsub.f32 %v631, %v805
      %v859 = vsub.f32 %v634, %v810
      %v860 = vsub.f32 %v637, %v815
      %v861 = vsub.f32 %v640, %v820
      %v862 = vsub.f32 %v643, %v825
      %v863 = vsub.f32 %v646, %v830
      %v864 = vsub.f32 %v649, %v835
      %v865 = vsub.f32 %v652, %v840
      %v866 = vsub.f32 %v655, %v845
      %v867 = vsub.f32 %v658, %v850
      %v868 = vmul.f32 %v852, 1.442695
      %v869 = vpow.pop %v868
      %v870 = vmul.f32 %v853, 1.442695
      %v871 = vpow.pop %v870
      %v872 = vmul.f32 %v854, 1.442695
      %v873 = vpow.pop %v872
      %v874 = vmul.f32 %v855, 1.442695
      %v875 = vpow.pop %v874
      %v876 = vmul.f32 %v856, 1.442695
      %v877 = vpow.pop %v876
      %v878 = vmul.f32 %v857, 1.442695
      %v879 = vpow.pop %v878
      %v880 = vmul.f32 %v858, 1.442695
      %v881 = vpow.pop %v880
      %v882 = vmul.f32 %v859, 1.442695
      %v883 = vpow.pop %v882
      %v884 = vmul.f32 %v860, 1.442695
      %v885 = vpow.pop %v884
      %v886 = vmul.f32 %v861, 1.442695
      %v887 = vpow.pop %v886
      %v888 = vmul.f32 %v862, 1.442695
      %v889 = vpow.pop %v888
      %v890 = vmul.f32 %v863, 1.442695
      %v891 = vpow.pop %v890
      %v892 = vmul.f32 %v864, 1.442695
      %v893 = vpow.pop %v892
      %v894 = vmul.f32 %v865, 1.442695
      %v895 = vpow.pop %v894
      %v896 = vmul.f32 %v866, 1.442695
      %v897 = vpow.pop %v896
      %v898 = vmul.f32 %v867, 1.442695
      %v899 = vpow.pop %v898
      %v900 = vld [vmem:[#allocation3] sm:$0xff]
      %v901 = vld [vmem:[#allocation3 + $0x8] sm:$0xff]
      %v902 = vld [vmem:[#allocation3 + $0x10] sm:$0xff]
      %v903 = vld [vmem:[#allocation3 + $0x18] sm:$0xff]
      %v904 = vld [vmem:[#allocation3 + $0x20] sm:$0xff]
      %v905 = vld [vmem:[#allocation3 + $0x28] sm:$0xff]
      %v906 = vld [vmem:[#allocation3 + $0x30] sm:$0xff]
      %v907 = vld [vmem:[#allocation3 + $0x38] sm:$0xff]
      %v908 = vld [vmem:[#allocation3 + $0x40] sm:$0xff]
      %v909 = vld [vmem:[#allocation3 + $0x48] sm:$0xff]
      %v910 = vld [vmem:[#allocation3 + $0x50] sm:$0xff]
      %v911 = vld [vmem:[#allocation3 + $0x58] sm:$0xff]
      %v912 = vld [vmem:[#allocation3 + $0x60] sm:$0xff]
      %v913 = vld [vmem:[#allocation3 + $0x68] sm:$0xff]
      %v914 = vld [vmem:[#allocation3 + $0x70] sm:$0xff]
      %v915 = vld [vmem:[#allocation3 + $0x78] sm:$0xff]
      %v916 = vmul.f32 %v741, %v900
      %v917 = vmul.f32 %v743, %v901
      %v918 = vmul.f32 %v745, %v902
      %v919 = vmul.f32 %v747, %v903
      %v920 = vmul.f32 %v749, %v904
      %v921 = vmul.f32 %v751, %v905
      %v922 = vmul.f32 %v753, %v906
      %v923 = vmul.f32 %v755, %v907
      %v924 = vmul.f32 %v757, %v908
      %v925 = vmul.f32 %v759, %v909
      %v926 = vmul.f32 %v761, %v910
      %v927 = vmul.f32 %v763, %v911
      %v928 = vmul.f32 %v765, %v912
      %v929 = vmul.f32 %v767, %v913
      %v930 = vmul.f32 %v769, %v914
      %v931 = vmul.f32 %v771, %v915
      %932 = vadd.xlane.f32.xlu0 %v869
      %v933 = vpop.xlane.xlu0 %932
      %934 = vadd.xlane.f32.xlu0 %v871
      %v935 = vpop.xlane.xlu0 %934
      %936 = vadd.xlane.f32.xlu0 %v873
      %v937 = vpop.xlane.xlu0 %936
      %938 = vadd.xlane.f32.xlu0 %v875
      %v939 = vpop.xlane.xlu0 %938
      %940 = vadd.xlane.f32.xlu0 %v877
      %v941 = vpop.xlane.xlu0 %940
      %942 = vadd.xlane.f32.xlu0 %v879
      %v943 = vpop.xlane.xlu0 %942
      %944 = vadd.xlane.f32.xlu0 %v881
      %v945 = vpop.xlane.xlu0 %944
      %946 = vadd.xlane.f32.xlu0 %v883
      %v947 = vpop.xlane.xlu0 %946
      %948 = vadd.xlane.f32.xlu0 %v885
      %v949 = vpop.xlane.xlu0 %948
      %950 = vadd.xlane.f32.xlu0 %v887
      %v951 = vpop.xlane.xlu0 %950
      %952 = vadd.xlane.f32.xlu0 %v889
      %v953 = vpop.xlane.xlu0 %952
      %954 = vadd.xlane.f32.xlu0 %v891
      %v955 = vpop.xlane.xlu0 %954
      %956 = vadd.xlane.f32.xlu0 %v893
      %v957 = vpop.xlane.xlu0 %956
      %958 = vadd.xlane.f32.xlu0 %v895
      %v959 = vpop.xlane.xlu0 %958
      %960 = vadd.xlane.f32.xlu0 %v897
      %v961 = vpop.xlane.xlu0 %960
      %962 = vadd.xlane.f32.xlu0 %v899
      %v963 = vpop.xlane.xlu0 %962
      %v964 = vadd.f32 %v916, %v933
      %v965 = vadd.f32 %v917, %v935
      %v966 = vadd.f32 %v918, %v937
      %v967 = vadd.f32 %v919, %v939
      %v968 = vadd.f32 %v920, %v941
      %v969 = vadd.f32 %v921, %v943
      %v970 = vadd.f32 %v922, %v945
      %v971 = vadd.f32 %v923, %v947
      %v972 = vadd.f32 %v924, %v949
      %v973 = vadd.f32 %v925, %v951
      %v974 = vadd.f32 %v926, %v953
      %v975 = vadd.f32 %v927, %v955
      %v976 = vadd.f32 %v928, %v957
      %v977 = vadd.f32 %v929, %v959
      %v978 = vadd.f32 %v930, %v961
      %v979 = vadd.f32 %v931, %v963
      %980 = vst [vmem:[#allocation3] sm:$0xff] %v964
      %981 = vst [vmem:[#allocation3 + $0x8] sm:$0xff] %v965
      %982 = vst [vmem:[#allocation3 + $0x10] sm:$0xff] %v966
      %983 = vst [vmem:[#allocation3 + $0x18] sm:$0xff] %v967
      %984 = vst [vmem:[#allocation3 + $0x20] sm:$0xff] %v968
      %985 = vst [vmem:[#allocation3 + $0x28] sm:$0xff] %v969
      %986 = vst [vmem:[#allocation3 + $0x30] sm:$0xff] %v970
      %987 = vst [vmem:[#allocation3 + $0x38] sm:$0xff] %v971
      %988 = vst [vmem:[#allocation3 + $0x40] sm:$0xff] %v972
      %989 = vst [vmem:[#allocation3 + $0x48] sm:$0xff] %v973
      %990 = vst [vmem:[#allocation3 + $0x50] sm:$0xff] %v974
      %991 = vst [vmem:[#allocation3 + $0x58] sm:$0xff] %v975
      %992 = vst [vmem:[#allocation3 + $0x60] sm:$0xff] %v976
      %993 = vst [vmem:[#allocation3 + $0x68] sm:$0xff] %v977
      %994 = vst [vmem:[#allocation3 + $0x70] sm:$0xff] %v978
      %995 = vst [vmem:[#allocation3 + $0x78] sm:$0xff] %v979
      %v996 = vld [vmem:[#allocation4] sm:$0xff]
      %v997 = vld [vmem:[#allocation4 + $0x8] sm:$0xff]
      %v998 = vld [vmem:[#allocation4 + $0x10] sm:$0xff]
      %v999 = vld [vmem:[#allocation4 + $0x18] sm:$0xff]
      %v1000 = vld [vmem:[#allocation4 + $0x20] sm:$0xff]
      %v1001 = vld [vmem:[#allocation4 + $0x28] sm:$0xff]
      %v1002 = vld [vmem:[#allocation4 + $0x30] sm:$0xff]
      %v1003 = vld [vmem:[#allocation4 + $0x38] sm:$0xff]
      %v1004 = vld [vmem:[#allocation4 + $0x40] sm:$0xff]
      %v1005 = vld [vmem:[#allocation4 + $0x48] sm:$0xff]
      %v1006 = vld [vmem:[#allocation4 + $0x50] sm:$0xff]
      %v1007 = vld [vmem:[#allocation4 + $0x58] sm:$0xff]
      %v1008 = vld [vmem:[#allocation4 + $0x60] sm:$0xff]
      %v1009 = vld [vmem:[#allocation4 + $0x68] sm:$0xff]
      %v1010 = vld [vmem:[#allocation4 + $0x70] sm:$0xff]
      %v1011 = vld [vmem:[#allocation4 + $0x78] sm:$0xff]
      %1013 = vset.pattern.permute.xlu0 0
      %1014 = vperm.xlu0 %1013, %v741
      %v1015 = vpop.permute.xlu0 %1014
      %1018 = vset.pattern.permute.xlu0 0
      %1019 = vperm.xlu0 %1018, %v743
      %v1020 = vpop.permute.xlu0 %1019
      %1023 = vset.pattern.permute.xlu0 0
      %1024 = vperm.xlu0 %1023, %v745
      %v1025 = vpop.permute.xlu0 %1024
      %1028 = vset.pattern.permute.xlu0 0
      %1029 = vperm.xlu0 %1028, %v747
      %v1030 = vpop.permute.xlu0 %1029
      %1033 = vset.pattern.permute.xlu0 0
      %1034 = vperm.xlu0 %1033, %v749
      %v1035 = vpop.permute.xlu0 %1034
      %1038 = vset.pattern.permute.xlu0 0
      %1039 = vperm.xlu0 %1038, %v751
      %v1040 = vpop.permute.xlu0 %1039
      %1043 = vset.pattern.permute.xlu0 0
      %1044 = vperm.xlu0 %1043, %v753
      %v1045 = vpop.permute.xlu0 %1044
      %1048 = vset.pattern.permute.xlu0 0
      %1049 = vperm.xlu0 %1048, %v755
      %v1050 = vpop.permute.xlu0 %1049
      %1053 = vset.pattern.permute.xlu0 0
      %1054 = vperm.xlu0 %1053, %v757
      %v1055 = vpop.permute.xlu0 %1054
      %1058 = vset.pattern.permute.xlu0 0
      %1059 = vperm.xlu0 %1058, %v759
      %v1060 = vpop.permute.xlu0 %1059
      %1063 = vset.pattern.permute.xlu0 0
      %1064 = vperm.xlu0 %1063, %v761
      %v1065 = vpop.permute.xlu0 %1064
      %1068 = vset.pattern.permute.xlu0 0
      %1069 = vperm.xlu0 %1068, %v763
      %v1070 = vpop.permute.xlu0 %1069
      %1073 = vset.pattern.permute.xlu0 0
      %1074 = vperm.xlu0 %1073, %v765
      %v1075 = vpop.permute.xlu0 %1074
      %1078 = vset.pattern.permute.xlu0 0
      %1079 = vperm.xlu0 %1078, %v767
      %v1080 = vpop.permute.xlu0 %1079
      %1083 = vset.pattern.permute.xlu0 0
      %1084 = vperm.xlu0 %1083, %v769
      %v1085 = vpop.permute.xlu0 %1084
      %1088 = vset.pattern.permute.xlu0 0
      %1089 = vperm.xlu0 %1088, %v771
      %v1090 = vpop.permute.xlu0 %1089
      %v1092 = vmul.f32 %v1015, %v996
      %v1093 = vmul.f32 %v1020, %v997
      %v1094 = vmul.f32 %v1025, %v998
      %v1095 = vmul.f32 %v1030, %v999
      %v1096 = vmul.f32 %v1035, %v1000
      %v1097 = vmul.f32 %v1040, %v1001
      %v1098 = vmul.f32 %v1045, %v1002
      %v1099 = vmul.f32 %v1050, %v1003
      %v1100 = vmul.f32 %v1055, %v1004
      %v1101 = vmul.f32 %v1060, %v1005
      %v1102 = vmul.f32 %v1065, %v1006
      %v1103 = vmul.f32 %v1070, %v1007
      %v1104 = vmul.f32 %v1075, %v1008
      %v1105 = vmul.f32 %v1080, %v1009
      %v1106 = vmul.f32 %v1085, %v1010
      %v1107 = vmul.f32 %v1090, %v1011
      %v1108 = vld [vmem:[%s373] sm:$0xff]
      %v1109 = vld [vmem:[%s373 + $0x8] sm:$0xff]
      %v1110 = vld [vmem:[%s373 + $0x10] sm:$0xff]
      %v1111 = vld [vmem:[%s373 + $0x18] sm:$0xff]
      %v1112 = vld [vmem:[%s373 + $0x20] sm:$0xff]
      %v1113 = vld [vmem:[%s373 + $0x28] sm:$0xff]
      %v1114 = vld [vmem:[%s373 + $0x30] sm:$0xff]
      %v1115 = vld [vmem:[%s373 + $0x38] sm:$0xff]
      %v1116 = vld [vmem:[%s373 + $0x40] sm:$0xff]
      %v1117 = vld [vmem:[%s373 + $0x48] sm:$0xff]
      %v1118 = vld [vmem:[%s373 + $0x50] sm:$0xff]
      %v1119 = vld [vmem:[%s373 + $0x58] sm:$0xff]
      %v1120 = vld [vmem:[%s373 + $0x60] sm:$0xff]
      %v1121 = vld [vmem:[%s373 + $0x68] sm:$0xff]
      %v1122 = vld [vmem:[%s373 + $0x70] sm:$0xff]
      %v1123 = vld [vmem:[%s373 + $0x78] sm:$0xff]
      %1124 = vmatpush.msra.mxu0 %v1123
      %1125 = vmatpush.msra.mxu0 %v1122
      %1126 = vmatpush.msra.mxu0 %v1121
      %1127 = vmatpush.msra.mxu0 %v1120
      %1128 = vmatpush.msra.mxu0 %v1119
      %1129 = vmatpush.msra.mxu0 %v1118
      %1130 = vmatpush.msra.mxu0 %v1117
      %1131 = vmatpush.msra.mxu0 %v1116
      %1132 = vmatpush.msra.mxu0 %v1115
      %1133 = vmatpush.msra.mxu0 %v1114
      %1134 = vmatpush.msra.mxu0 %v1113
      %1135 = vmatpush.msra.mxu0 %v1112
      %1136 = vmatpush.msra.mxu0 %v1111
      %1137 = vmatpush.msra.mxu0 %v1110
      %1138 = vmatpush.msra.mxu0 %v1109
      %1139 = vmatpush.msra.mxu0 %v1108
      %1140 = vmatmul.f32.gmra.mxu0 %v869
      %v1141 = vpop.f32.mrf.mxu0
      %v1142 = vadd.f32 0.0, %v1141
      %1143 = vmatmul.f32.gmra.mxu0 %v871
      %v1144 = vpop.f32.mrf.mxu0
      %v1145 = vadd.f32 0.0, %v1144
      %1146 = vmatmul.f32.gmra.mxu0 %v873
      %v1147 = vpop.f32.mrf.mxu0
      %v1148 = vadd.f32 0.0, %v1147
      %1149 = vmatmul.f32.gmra.mxu0 %v875
      %v1150 = vpop.f32.mrf.mxu0
      %v1151 = vadd.f32 0.0, %v1150
      %1152 = vmatmul.f32.gmra.mxu0 %v877
      %v1153 = vpop.f32.mrf.mxu0
      %v1154 = vadd.f32 0.0, %v1153
      %1155 = vmatmul.f32.gmra.mxu0 %v879
      %v1156 = vpop.f32.mrf.mxu0
      %v1157 = vadd.f32 0.0, %v1156
      %1158 = vmatmul.f32.gmra.mxu0 %v881
      %v1159 = vpop.f32.mrf.mxu0
      %v1160 = vadd.f32 0.0, %v1159
      %1161 = vmatmul.f32.gmra.mxu0 %v883
      %v1162 = vpop.f32.mrf.mxu0
      %v1163 = vadd.f32 0.0, %v1162
      %1164 = vmatmul.f32.gmra.mxu0 %v885
      %v1165 = vpop.f32.mrf.mxu0
      %v1166 = vadd.f32 0.0, %v1165
      %1167 = vmatmul.f32.gmra.mxu0 %v887
      %v1168 = vpop.f32.mrf.mxu0
      %v1169 = vadd.f32 0.0, %v1168
      %1170 = vmatmul.f32.gmra.mxu0 %v889
      %v1171 = vpop.f32.mrf.mxu0
      %v1172 = vadd.f32 0.0, %v1171
      %1173 = vmatmul.f32.gmra.mxu0 %v891
      %v1174 = vpop.f32.mrf.mxu0
      %v1175 = vadd.f32 0.0, %v1174
      %1176 = vmatmul.f32.gmra.mxu0 %v893
      %v1177 = vpop.f32.mrf.mxu0
      %v1178 = vadd.f32 0.0, %v1177
      %1179 = vmatmul.f32.gmra.mxu0 %v895
      %v1180 = vpop.f32.mrf.mxu0
      %v1181 = vadd.f32 0.0, %v1180
      %1182 = vmatmul.f32.gmra.mxu0 %v897
      %v1183 = vpop.f32.mrf.mxu0
      %v1184 = vadd.f32 0.0, %v1183
      %1185 = vmatmul.f32.gmra.mxu0 %v899
      %v1186 = vpop.f32.mrf.mxu0
      %v1187 = vadd.f32 0.0, %v1186
      %1188 = vdwg.mxu0
      %v1189 = vadd.f32 %v1092, %v1142
      %v1190 = vadd.f32 %v1093, %v1145
      %v1191 = vadd.f32 %v1094, %v1148
      %v1192 = vadd.f32 %v1095, %v1151
      %v1193 = vadd.f32 %v1096, %v1154
      %v1194 = vadd.f32 %v1097, %v1157
      %v1195 = vadd.f32 %v1098, %v1160
      %v1196 = vadd.f32 %v1099, %v1163
      %v1197 = vadd.f32 %v1100, %v1166
      %v1198 = vadd.f32 %v1101, %v1169
      %v1199 = vadd.f32 %v1102, %v1172
      %v1200 = vadd.f32 %v1103, %v1175
      %v1201 = vadd.f32 %v1104, %v1178
      %v1202 = vadd.f32 %v1105, %v1181
      %v1203 = vadd.f32 %v1106, %v1184
      %v1204 = vadd.f32 %v1107, %v1187
      %1205 = vst.msk [vmem:[#allocation4] sm:$0xff] %vm498, %v1189
      %1206 = vst.msk [vmem:[#allocation4 + $0x8] sm:$0xff] %vm498, %v1190
      %1207 = vst.msk [vmem:[#allocation4 + $0x10] sm:$0xff] %vm498, %v1191
      %1208 = vst.msk [vmem:[#allocation4 + $0x18] sm:$0xff] %vm498, %v1192
      %1209 = vst.msk [vmem:[#allocation4 + $0x20] sm:$0xff] %vm498, %v1193
      %1210 = vst.msk [vmem:[#allocation4 + $0x28] sm:$0xff] %vm498, %v1194
      %1211 = vst.msk [vmem:[#allocation4 + $0x30] sm:$0xff] %vm498, %v1195
      %1212 = vst.msk [vmem:[#allocation4 + $0x38] sm:$0xff] %vm498, %v1196
      %1213 = vst.msk [vmem:[#allocation4 + $0x40] sm:$0xff] %vm498, %v1197
      %1214 = vst.msk [vmem:[#allocation4 + $0x48] sm:$0xff] %vm498, %v1198
      %1215 = vst.msk [vmem:[#allocation4 + $0x50] sm:$0xff] %vm498, %v1199
      %1216 = vst.msk [vmem:[#allocation4 + $0x58] sm:$0xff] %vm498, %v1200
      %1217 = vst.msk [vmem:[#allocation4 + $0x60] sm:$0xff] %vm498, %v1201
      %1218 = vst.msk [vmem:[#allocation4 + $0x68] sm:$0xff] %vm498, %v1202
      %1219 = vst.msk [vmem:[#allocation4 + $0x70] sm:$0xff] %vm498, %v1203
      %1220 = vst.msk [vmem:[#allocation4 + $0x78] sm:$0xff] %vm498, %v1204
      %1221 = vst [vmem:[#allocation2] sm:$0xff] %v708
      %1222 = vst [vmem:[#allocation2 + $0x8] sm:$0xff] %v709
      %1223 = vst [vmem:[#allocation2 + $0x10] sm:$0xff] %v710
      %1224 = vst [vmem:[#allocation2 + $0x18] sm:$0xff] %v711
      %1225 = vst [vmem:[#allocation2 + $0x20] sm:$0xff] %v712
      %1226 = vst [vmem:[#allocation2 + $0x28] sm:$0xff] %v713
      %1227 = vst [vmem:[#allocation2 + $0x30] sm:$0xff] %v714
      %1228 = vst [vmem:[#allocation2 + $0x38] sm:$0xff] %v715
      %1229 = vst [vmem:[#allocation2 + $0x40] sm:$0xff] %v716
      %1230 = vst [vmem:[#allocation2 + $0x48] sm:$0xff] %v717
      %1231 = vst [vmem:[#allocation2 + $0x50] sm:$0xff] %v718
      %1232 = vst [vmem:[#allocation2 + $0x58] sm:$0xff] %v719
      %1233 = vst [vmem:[#allocation2 + $0x60] sm:$0xff] %v720
      %1234 = vst [vmem:[#allocation2 + $0x68] sm:$0xff] %v721
      %1235 = vst [vmem:[#allocation2 + $0x70] sm:$0xff] %v722
      %1236 = vst [vmem:[#allocation2 + $0x78] sm:$0xff] %v723
      // Predicated region
      $region41: #{tpu_custom_call.1} parent=35 // pred_check
        %p1237 = pneg %p389
      $region42: #{tpu_custom_call.1} parent=35 // pred_check_branch
        %1239 = sbr.rel (%p1237) target = $region44
      $region43: #{tpu_custom_call.1} parent=35 // pred_region
        %v1240 = vld [vmem:[#allocation3] sm:$0xff]
        %v1241 = vld [vmem:[#allocation3 + $0x8] sm:$0xff]
        %v1242 = vld [vmem:[#allocation3 + $0x10] sm:$0xff]
        %v1243 = vld [vmem:[#allocation3 + $0x18] sm:$0xff]
        %v1244 = vld [vmem:[#allocation3 + $0x20] sm:$0xff]
        %v1245 = vld [vmem:[#allocation3 + $0x28] sm:$0xff]
        %v1246 = vld [vmem:[#allocation3 + $0x30] sm:$0xff]
        %v1247 = vld [vmem:[#allocation3 + $0x38] sm:$0xff]
        %v1248 = vld [vmem:[#allocation3 + $0x40] sm:$0xff]
        %v1249 = vld [vmem:[#allocation3 + $0x48] sm:$0xff]
        %v1250 = vld [vmem:[#allocation3 + $0x50] sm:$0xff]
        %v1251 = vld [vmem:[#allocation3 + $0x58] sm:$0xff]
        %v1252 = vld [vmem:[#allocation3 + $0x60] sm:$0xff]
        %v1253 = vld [vmem:[#allocation3 + $0x68] sm:$0xff]
        %v1254 = vld [vmem:[#allocation3 + $0x70] sm:$0xff]
        %v1255 = vld [vmem:[#allocation3 + $0x78] sm:$0xff]
        %v1256 = vld [vmem:[#allocation4] sm:$0xff]
        %v1257 = vld [vmem:[#allocation4 + $0x8] sm:$0xff]
        %v1258 = vld [vmem:[#allocation4 + $0x10] sm:$0xff]
        %v1259 = vld [vmem:[#allocation4 + $0x18] sm:$0xff]
        %v1260 = vld [vmem:[#allocation4 + $0x20] sm:$0xff]
        %v1261 = vld [vmem:[#allocation4 + $0x28] sm:$0xff]
        %v1262 = vld [vmem:[#allocation4 + $0x30] sm:$0xff]
        %v1263 = vld [vmem:[#allocation4 + $0x38] sm:$0xff]
        %v1264 = vld [vmem:[#allocation4 + $0x40] sm:$0xff]
        %v1265 = vld [vmem:[#allocation4 + $0x48] sm:$0xff]
        %v1266 = vld [vmem:[#allocation4 + $0x50] sm:$0xff]
        %v1267 = vld [vmem:[#allocation4 + $0x58] sm:$0xff]
        %v1268 = vld [vmem:[#allocation4 + $0x60] sm:$0xff]
        %v1269 = vld [vmem:[#allocation4 + $0x68] sm:$0xff]
        %v1270 = vld [vmem:[#allocation4 + $0x70] sm:$0xff]
        %v1271 = vld [vmem:[#allocation4 + $0x78] sm:$0xff]
        %1273 = vset.pattern.permute.xlu0 0
        %1274 = vperm.xlu0 %1273, %v1240
        %v1275 = vpop.permute.xlu0 %1274
        %1278 = vset.pattern.permute.xlu0 0
        %1279 = vperm.xlu0 %1278, %v1241
        %v1280 = vpop.permute.xlu0 %1279
        %1283 = vset.pattern.permute.xlu0 0
        %1284 = vperm.xlu0 %1283, %v1242
        %v1285 = vpop.permute.xlu0 %1284
        %1288 = vset.pattern.permute.xlu0 0
        %1289 = vperm.xlu0 %1288, %v1243
        %v1290 = vpop.permute.xlu0 %1289
        %1293 = vset.pattern.permute.xlu0 0
        %1294 = vperm.xlu0 %1293, %v1244
        %v1295 = vpop.permute.xlu0 %1294
        %1298 = vset.pattern.permute.xlu0 0
        %1299 = vperm.xlu0 %1298, %v1245
        %v1300 = vpop.permute.xlu0 %1299
        %1303 = vset.pattern.permute.xlu0 0
        %1304 = vperm.xlu0 %1303, %v1246
        %v1305 = vpop.permute.xlu0 %1304
        %1308 = vset.pattern.permute.xlu0 0
        %1309 = vperm.xlu0 %1308, %v1247
        %v1310 = vpop.permute.xlu0 %1309
        %1313 = vset.pattern.permute.xlu0 0
        %1314 = vperm.xlu0 %1313, %v1248
        %v1315 = vpop.permute.xlu0 %1314
        %1318 = vset.pattern.permute.xlu0 0
        %1319 = vperm.xlu0 %1318, %v1249
        %v1320 = vpop.permute.xlu0 %1319
        %1323 = vset.pattern.permute.xlu0 0
        %1324 = vperm.xlu0 %1323, %v1250
        %v1325 = vpop.permute.xlu0 %1324
        %1328 = vset.pattern.permute.xlu0 0
        %1329 = vperm.xlu0 %1328, %v1251
        %v1330 = vpop.permute.xlu0 %1329
        %1333 = vset.pattern.permute.xlu0 0
        %1334 = vperm.xlu0 %1333, %v1252
        %v1335 = vpop.permute.xlu0 %1334
        %1338 = vset.pattern.permute.xlu0 0
        %1339 = vperm.xlu0 %1338, %v1253
        %v1340 = vpop.permute.xlu0 %1339
        %1343 = vset.pattern.permute.xlu0 0
        %1344 = vperm.xlu0 %1343, %v1254
        %v1345 = vpop.permute.xlu0 %1344
        %1348 = vset.pattern.permute.xlu0 0
        %1349 = vperm.xlu0 %1348, %v1255
        %v1350 = vpop.permute.xlu0 %1349
        %v1352 = vrcp.pop %v1275
        %v1353 = vmul.f32 %v1275, %v1352
        %v1354 = vsub.f32 1.0, %v1353
        %v1355 = vmul.f32 %v1352, %v1354
        %v1356 = vadd.f32 %v1352, %v1355
        %vm1357 = vweird.f32 %v1275
        %vm1358 = vweird.f32 %v1352
        %vm1359 = vmor %vm1357, %vm1358
        %v1360 = vsel %vm1359, %v1352, %v1356
        %v1361 = vand.u32 2147483647, %v1275
        %vm1362 = vcmp.eq.f32.partialorder %v1361, 8.507059e+37
        %v1363 = vand.u32 %v1275, 2147483648
        %v1364 = vor.u32 1.1754944e-38, %v1363
        %v1365 = vsel %vm1362, %v1364, %v1360
        %v1366 = vmul.f32 %v1256, %v1365
        %v1367 = vrcp.pop %v1280
        %v1368 = vmul.f32 %v1280, %v1367
        %v1369 = vsub.f32 1.0, %v1368
        %v1370 = vmul.f32 %v1367, %v1369
        %v1371 = vadd.f32 %v1367, %v1370
        %vm1372 = vweird.f32 %v1280
        %vm1373 = vweird.f32 %v1367
        %vm1374 = vmor %vm1372, %vm1373
        %v1375 = vsel %vm1374, %v1367, %v1371
        %v1376 = vand.u32 2147483647, %v1280
        %vm1377 = vcmp.eq.f32.partialorder %v1376, 8.507059e+37
        %v1378 = vand.u32 %v1280, 2147483648
        %v1379 = vor.u32 1.1754944e-38, %v1378
        %v1380 = vsel %vm1377, %v1379, %v1375
        %v1381 = vmul.f32 %v1257, %v1380
        %v1382 = vrcp.pop %v1285
        %v1383 = vmul.f32 %v1285, %v1382
        %v1384 = vsub.f32 1.0, %v1383
        %v1385 = vmul.f32 %v1382, %v1384
        %v1386 = vadd.f32 %v1382, %v1385
        %vm1387 = vweird.f32 %v1285
        %vm1388 = vweird.f32 %v1382
        %vm1389 = vmor %vm1387, %vm1388
        %v1390 = vsel %vm1389, %v1382, %v1386
        %v1391 = vand.u32 2147483647, %v1285
        %vm1392 = vcmp.eq.f32.partialorder %v1391, 8.507059e+37
        %v1393 = vand.u32 %v1285, 2147483648
        %v1394 = vor.u32 1.1754944e-38, %v1393
        %v1395 = vsel %vm1392, %v1394, %v1390
        %v1396 = vmul.f32 %v1258, %v1395
        %v1397 = vrcp.pop %v1290
        %v1398 = vmul.f32 %v1290, %v1397
        %v1399 = vsub.f32 1.0, %v1398
        %v1400 = vmul.f32 %v1397, %v1399
        %v1401 = vadd.f32 %v1397, %v1400
        %vm1402 = vweird.f32 %v1290
        %vm1403 = vweird.f32 %v1397
        %vm1404 = vmor %vm1402, %vm1403
        %v1405 = vsel %vm1404, %v1397, %v1401
        %v1406 = vand.u32 2147483647, %v1290
        %vm1407 = vcmp.eq.f32.partialorder %v1406, 8.507059e+37
        %v1408 = vand.u32 %v1290, 2147483648
        %v1409 = vor.u32 1.1754944e-38, %v1408
        %v1410 = vsel %vm1407, %v1409, %v1405
        %v1411 = vmul.f32 %v1259, %v1410
        %v1412 = vrcp.pop %v1295
        %v1413 = vmul.f32 %v1295, %v1412
        %v1414 = vsub.f32 1.0, %v1413
        %v1415 = vmul.f32 %v1412, %v1414
        %v1416 = vadd.f32 %v1412, %v1415
        %vm1417 = vweird.f32 %v1295
        %vm1418 = vweird.f32 %v1412
        %vm1419 = vmor %vm1417, %vm1418
        %v1420 = vsel %vm1419, %v1412, %v1416
        %v1421 = vand.u32 2147483647, %v1295
        %vm1422 = vcmp.eq.f32.partialorder %v1421, 8.507059e+37
        %v1423 = vand.u32 %v1295, 2147483648
        %v1424 = vor.u32 1.1754944e-38, %v1423
        %v1425 = vsel %vm1422, %v1424, %v1420
        %v1426 = vmul.f32 %v1260, %v1425
        %v1427 = vrcp.pop %v1300
        %v1428 = vmul.f32 %v1300, %v1427
        %v1429 = vsub.f32 1.0, %v1428
        %v1430 = vmul.f32 %v1427, %v1429
        %v1431 = vadd.f32 %v1427, %v1430
        %vm1432 = vweird.f32 %v1300
        %vm1433 = vweird.f32 %v1427
        %vm1434 = vmor %vm1432, %vm1433
        %v1435 = vsel %vm1434, %v1427, %v1431
        %v1436 = vand.u32 2147483647, %v1300
        %vm1437 = vcmp.eq.f32.partialorder %v1436, 8.507059e+37
        %v1438 = vand.u32 %v1300, 2147483648
        %v1439 = vor.u32 1.1754944e-38, %v1438
        %v1440 = vsel %vm1437, %v1439, %v1435
        %v1441 = vmul.f32 %v1261, %v1440
        %v1442 = vrcp.pop %v1305
        %v1443 = vmul.f32 %v1305, %v1442
        %v1444 = vsub.f32 1.0, %v1443
        %v1445 = vmul.f32 %v1442, %v1444
        %v1446 = vadd.f32 %v1442, %v1445
        %vm1447 = vweird.f32 %v1305
        %vm1448 = vweird.f32 %v1442
        %vm1449 = vmor %vm1447, %vm1448
        %v1450 = vsel %vm1449, %v1442, %v1446
        %v1451 = vand.u32 2147483647, %v1305
        %vm1452 = vcmp.eq.f32.partialorder %v1451, 8.507059e+37
        %v1453 = vand.u32 %v1305, 2147483648
        %v1454 = vor.u32 1.1754944e-38, %v1453
        %v1455 = vsel %vm1452, %v1454, %v1450
        %v1456 = vmul.f32 %v1262, %v1455
        %v1457 = vrcp.pop %v1310
        %v1458 = vmul.f32 %v1310, %v1457
        %v1459 = vsub.f32 1.0, %v1458
        %v1460 = vmul.f32 %v1457, %v1459
        %v1461 = vadd.f32 %v1457, %v1460
        %vm1462 = vweird.f32 %v1310
        %vm1463 = vweird.f32 %v1457
        %vm1464 = vmor %vm1462, %vm1463
        %v1465 = vsel %vm1464, %v1457, %v1461
        %v1466 = vand.u32 2147483647, %v1310
        %vm1467 = vcmp.eq.f32.partialorder %v1466, 8.507059e+37
        %v1468 = vand.u32 %v1310, 2147483648
        %v1469 = vor.u32 1.1754944e-38, %v1468
        %v1470 = vsel %vm1467, %v1469, %v1465
        %v1471 = vmul.f32 %v1263, %v1470
        %v1472 = vrcp.pop %v1315
        %v1473 = vmul.f32 %v1315, %v1472
        %v1474 = vsub.f32 1.0, %v1473
        %v1475 = vmul.f32 %v1472, %v1474
        %v1476 = vadd.f32 %v1472, %v1475
        %vm1477 = vweird.f32 %v1315
        %vm1478 = vweird.f32 %v1472
        %vm1479 = vmor %vm1477, %vm1478
        %v1480 = vsel %vm1479, %v1472, %v1476
        %v1481 = vand.u32 2147483647, %v1315
        %vm1482 = vcmp.eq.f32.partialorder %v1481, 8.507059e+37
        %v1483 = vand.u32 %v1315, 2147483648
        %v1484 = vor.u32 1.1754944e-38, %v1483
        %v1485 = vsel %vm1482, %v1484, %v1480
        %v1486 = vmul.f32 %v1264, %v1485
        %v1487 = vrcp.pop %v1320
        %v1488 = vmul.f32 %v1320, %v1487
        %v1489 = vsub.f32 1.0, %v1488
        %v1490 = vmul.f32 %v1487, %v1489
        %v1491 = vadd.f32 %v1487, %v1490
        %vm1492 = vweird.f32 %v1320
        %vm1493 = vweird.f32 %v1487
        %vm1494 = vmor %vm1492, %vm1493
        %v1495 = vsel %vm1494, %v1487, %v1491
        %v1496 = vand.u32 2147483647, %v1320
        %vm1497 = vcmp.eq.f32.partialorder %v1496, 8.507059e+37
        %v1498 = vand.u32 %v1320, 2147483648
        %v1499 = vor.u32 1.1754944e-38, %v1498
        %v1500 = vsel %vm1497, %v1499, %v1495
        %v1501 = vmul.f32 %v1265, %v1500
        %v1502 = vrcp.pop %v1325
        %v1503 = vmul.f32 %v1325, %v1502
        %v1504 = vsub.f32 1.0, %v1503
        %v1505 = vmul.f32 %v1502, %v1504
        %v1506 = vadd.f32 %v1502, %v1505
        %vm1507 = vweird.f32 %v1325
        %vm1508 = vweird.f32 %v1502
        %vm1509 = vmor %vm1507, %vm1508
        %v1510 = vsel %vm1509, %v1502, %v1506
        %v1511 = vand.u32 2147483647, %v1325
        %vm1512 = vcmp.eq.f32.partialorder %v1511, 8.507059e+37
        %v1513 = vand.u32 %v1325, 2147483648
        %v1514 = vor.u32 1.1754944e-38, %v1513
        %v1515 = vsel %vm1512, %v1514, %v1510
        %v1516 = vmul.f32 %v1266, %v1515
        %v1517 = vrcp.pop %v1330
        %v1518 = vmul.f32 %v1330, %v1517
        %v1519 = vsub.f32 1.0, %v1518
        %v1520 = vmul.f32 %v1517, %v1519
        %v1521 = vadd.f32 %v1517, %v1520
        %vm1522 = vweird.f32 %v1330
        %vm1523 = vweird.f32 %v1517
        %vm1524 = vmor %vm1522, %vm1523
        %v1525 = vsel %vm1524, %v1517, %v1521
        %v1526 = vand.u32 2147483647, %v1330
        %vm1527 = vcmp.eq.f32.partialorder %v1526, 8.507059e+37
        %v1528 = vand.u32 %v1330, 2147483648
        %v1529 = vor.u32 1.1754944e-38, %v1528
        %v1530 = vsel %vm1527, %v1529, %v1525
        %v1531 = vmul.f32 %v1267, %v1530
        %v1532 = vrcp.pop %v1335
        %v1533 = vmul.f32 %v1335, %v1532
        %v1534 = vsub.f32 1.0, %v1533
        %v1535 = vmul.f32 %v1532, %v1534
        %v1536 = vadd.f32 %v1532, %v1535
        %vm1537 = vweird.f32 %v1335
        %vm1538 = vweird.f32 %v1532
        %vm1539 = vmor %vm1537, %vm1538
        %v1540 = vsel %vm1539, %v1532, %v1536
        %v1541 = vand.u32 2147483647, %v1335
        %vm1542 = vcmp.eq.f32.partialorder %v1541, 8.507059e+37
        %v1543 = vand.u32 %v1335, 2147483648
        %v1544 = vor.u32 1.1754944e-38, %v1543
        %v1545 = vsel %vm1542, %v1544, %v1540
        %v1546 = vmul.f32 %v1268, %v1545
        %v1547 = vrcp.pop %v1340
        %v1548 = vmul.f32 %v1340, %v1547
        %v1549 = vsub.f32 1.0, %v1548
        %v1550 = vmul.f32 %v1547, %v1549
        %v1551 = vadd.f32 %v1547, %v1550
        %vm1552 = vweird.f32 %v1340
        %vm1553 = vweird.f32 %v1547
        %vm1554 = vmor %vm1552, %vm1553
        %v1555 = vsel %vm1554, %v1547, %v1551
        %v1556 = vand.u32 2147483647, %v1340
        %vm1557 = vcmp.eq.f32.partialorder %v1556, 8.507059e+37
        %v1558 = vand.u32 %v1340, 2147483648
        %v1559 = vor.u32 1.1754944e-38, %v1558
        %v1560 = vsel %vm1557, %v1559, %v1555
        %v1561 = vmul.f32 %v1269, %v1560
        %v1562 = vrcp.pop %v1345
        %v1563 = vmul.f32 %v1345, %v1562
        %v1564 = vsub.f32 1.0, %v1563
        %v1565 = vmul.f32 %v1562, %v1564
        %v1566 = vadd.f32 %v1562, %v1565
        %vm1567 = vweird.f32 %v1345
        %vm1568 = vweird.f32 %v1562
        %vm1569 = vmor %vm1567, %vm1568
        %v1570 = vsel %vm1569, %v1562, %v1566
        %v1571 = vand.u32 2147483647, %v1345
        %vm1572 = vcmp.eq.f32.partialorder %v1571, 8.507059e+37
        %v1573 = vand.u32 %v1345, 2147483648
        %v1574 = vor.u32 1.1754944e-38, %v1573
        %v1575 = vsel %vm1572, %v1574, %v1570
        %v1576 = vmul.f32 %v1270, %v1575
        %v1577 = vrcp.pop %v1350
        %v1578 = vmul.f32 %v1350, %v1577
        %v1579 = vsub.f32 1.0, %v1578
        %v1580 = vmul.f32 %v1577, %v1579
        %v1581 = vadd.f32 %v1577, %v1580
        %vm1582 = vweird.f32 %v1350
        %vm1583 = vweird.f32 %v1577
        %vm1584 = vmor %vm1582, %vm1583
        %v1585 = vsel %vm1584, %v1577, %v1581
        %v1586 = vand.u32 2147483647, %v1350
        %vm1587 = vcmp.eq.f32.partialorder %v1586, 8.507059e+37
        %v1588 = vand.u32 %v1350, 2147483648
        %v1589 = vor.u32 1.1754944e-38, %v1588
        %v1590 = vsel %vm1587, %v1589, %v1585
        %v1591 = vmul.f32 %v1271, %v1590
        %1592 = vst.msk [vmem:[%s387] sm:$0xff] %vm498, %v1366
        %1593 = vst.msk [vmem:[%s387 + $0x8] sm:$0xff] %vm498, %v1381
        %1594 = vst.msk [vmem:[%s387 + $0x10] sm:$0xff] %vm498, %v1396
        %1595 = vst.msk [vmem:[%s387 + $0x18] sm:$0xff] %vm498, %v1411
        %1596 = vst.msk [vmem:[%s387 + $0x20] sm:$0xff] %vm498, %v1426
        %1597 = vst.msk [vmem:[%s387 + $0x28] sm:$0xff] %vm498, %v1441
        %1598 = vst.msk [vmem:[%s387 + $0x30] sm:$0xff] %vm498, %v1456
        %1599 = vst.msk [vmem:[%s387 + $0x38] sm:$0xff] %vm498, %v1471
        %1600 = vst.msk [vmem:[%s387 + $0x40] sm:$0xff] %vm498, %v1486
        %1601 = vst.msk [vmem:[%s387 + $0x48] sm:$0xff] %vm498, %v1501
        %1602 = vst.msk [vmem:[%s387 + $0x50] sm:$0xff] %vm498, %v1516
        %1603 = vst.msk [vmem:[%s387 + $0x58] sm:$0xff] %vm498, %v1531
        %1604 = vst.msk [vmem:[%s387 + $0x60] sm:$0xff] %vm498, %v1546
        %1605 = vst.msk [vmem:[%s387 + $0x68] sm:$0xff] %vm498, %v1561
        %1606 = vst.msk [vmem:[%s387 + $0x70] sm:$0xff] %vm498, %v1576
        %1607 = vst.msk [vmem:[%s387 + $0x78] sm:$0xff] %vm498, %v1591
      $region44: #{tpu_custom_call.1} parent=35 // pred_fallthru
        _
      %s1608 = smul.u32 16, %s23
      %p1609 = scmp.lt.s32.totalorder %s21, 1
      %s1610 = scalar_select %p1609, %s21, 1
      %p1611 = scmp.lt.s32.totalorder %s22, 3
      %s1612 = scalar_select %p1611, %s22, 3
      %p1613 = scmp.lt.s32.totalorder %s1608, 15
      %s1614 = scalar_select %p1613, %s1608, 15
      %s1615 = smul.addr %s1612, 16
      %s1616 = sadd.s32 %s1614, %s1615
      %s1617 = smul.addr %s1610, 64
      %s1618 = sadd.s32 %s1616, %s1617
      %s1619 = smul.addr %s1618, 8
      %s1620 = scalar_lea.vmem %s4, %s1619
      // Predicated region
      $region45: #{tpu_custom_call.1} parent=35 // pred_check
        %p1621 = pneg %p179
      $region46: #{tpu_custom_call.1} parent=35 // pred_check_branch
        %1623 = sbr.rel (%p1621) target = $region48
      $region47: #{tpu_custom_call.1} parent=35 // pred_region
        %s1624 = smul.u32 16, %s23
      $region48: #{tpu_custom_call.1} parent=35 // pred_fallthru
        _
    $region36: #{tpu_custom_call.1} parent=5 // pred_fallthru
      _
    %p1625 = scmp.le.s32.totalorder 2, %s10
    // Predicated region
    $region49: #{tpu_custom_call.1} parent=5 // pred_check
      %p1626 = pneg %p1625
    $region50: #{tpu_custom_call.1} parent=5 // pred_check_branch
      %1628 = sbr.rel (%p1626) target = $region52
    $region51: #{tpu_custom_call.1} parent=5 // pred_region
      %s1629 = ssub.s32 %s10, 2
      // Predicated region
      $region53: #{tpu_custom_call.1} parent=51 // pred_check
        %p1630 = pneg %p185
      $region54: #{tpu_custom_call.1} parent=51 // pred_check_branch
        %1632 = sbr.rel (%p1630) target = $region56
      $region55: #{tpu_custom_call.1} parent=51 // pred_region
        %s1633 = smul.u32 16, %s27
        %p1634 = scmp.lt.s32.totalorder %s25, 1
        %s1635 = scalar_select %p1634, %s25, 1
        %p1636 = scmp.lt.s32.totalorder %s26, 3
        %s1637 = scalar_select %p1636, %s26, 3
        %p1638 = scmp.lt.s32.totalorder %s1633, 15
        %s1639 = scalar_select %p1638, %s1633, 15
        %s1640 = smul.addr %s1637, 16
        %s1641 = sadd.s32 %s1639, %s1640
        %s1642 = smul.addr %s1635, 64
        %s1643 = sadd.s32 %s1641, %s1642
        %s1644 = smul.addr %s1643, 8
        %s1645 = scalar_lea.vmem %s4, %s1644
      $region56: #{tpu_custom_call.1} parent=51 // pred_fallthru
        _
    $region52: #{tpu_custom_call.1} parent=5 // pred_fallthru
      _
  $region6: #{tpu_custom_call.1} parent=0 // loop_footer
    %s14 = sadd.s32 1, %s10
  $region7: #{tpu_custom_call.1} parent=0 // loop_footer_branch
    %9 = sbr.rel target = $region3
  $region8: #{tpu_custom_call.1} parent=0 // loop_exit
    _

</llo_original>
